<compile_context>
chip_gen: v7x
topology: tpu7x:2x2x1
jax: 0.10.0
libtpu: 0.0.40
codegen_flags: <defaults>
</compile_context>

<pallas_src>
import jax
import jax.numpy as jnp
from jax.experimental import pallas as pl
from jax.experimental.pallas import tpu as pltpu


_TB = 8      # batch rows per grid step (sublane aligned)
_LANE = 128  # lane width for the padded class dimension


def _round_up(x, m):
    return (x + m - 1) // m * m


def _make_kernel(tb, seq_len):
    def kernel(ids_ref, emb_hbm, w_ref, b_ref, out_ref, rowbuf, sems, acc):
        # ids_ref : (B_pad*S,)  int32  SMEM (scalar prefetch)
        # emb_hbm : (V, E)      f32    HBM  (memory_space=pl.ANY, manual DMA gather)
        # w_ref   : (E, C_pad)  f32    VMEM
        # b_ref   : (1, C_pad)  f32    VMEM
        # out_ref : (TB, C_pad) f32    VMEM
        # rowbuf  : (2, 1, E)   f32    VMEM scratch (double-buffered gathered row)
        # sems    : DMA semaphores (2,)
        # acc     : (TB, E)     f32    VMEM scratch (per-row embedding sums)
        vocab = emb_hbm.shape[0]
        base = pl.program_id(0) * (tb * seq_len)

        def start_fetch(r, s, slot):
            tok = ids_ref[base + r * seq_len + s]
            # PyTorch nn.Embedding would raise on out-of-range ids; we clamp to stay in-bounds.
            tok = jnp.clip(tok, 0, vocab - 1)
            pltpu.make_async_copy(emb_hbm.at[pl.ds(tok, 1), :],
                                  rowbuf.at[slot],
                                  sems.at[slot]).start()

        def wait_fetch(slot):
            pltpu.make_async_copy(emb_hbm.at[pl.ds(0, 1), :],
                                  rowbuf.at[slot],
                                  sems.at[slot]).wait()

        acc[...] = jnp.zeros_like(acc)

        for r in range(tb):                     # static unroll over the TB batch rows
            start_fetch(r, 0, 0)

            @pl.loop(0, seq_len)
            def _(s, r=r):
                slot = s % 2
                wait_fetch(slot)

                @pl.when(s + 1 < seq_len)
                def _():
                    start_fetch(r, s + 1, 1 - slot)

                acc[pl.ds(r, 1), :] = acc[pl.ds(r, 1), :] + rowbuf[slot]

        mean_emb = acc[...] * (1.0 / seq_len)   # (TB, E)
        logits = jnp.dot(mean_emb, w_ref[...],
                         preferred_element_type=jnp.float32) + b_ref[...]
        out_ref[...] = logits.astype(out_ref.dtype)   # lane-dense (TB, 128) store

    return kernel


def text_classification_forward(text, emb_table, fc_w, fc_b):
    """text: (B,S) int32 ids; emb_table: (V,E) f32; fc_w: (E,C) f32; fc_b: (1,C) f32 -> (B,C) f32."""
    B, S = text.shape
    V, E = emb_table.shape
    C = fc_w.shape[1]

    B_pad = _round_up(B, _TB)
    C_pad = _round_up(C, _LANE)

    # Pad batch rows (token 0, results discarded) and flatten ids for compact SMEM layout.
    ids = jnp.zeros((B_pad, S), jnp.int32).at[:B, :].set(text.astype(jnp.int32)).reshape(-1)
    # Lane-pad the classifier so the kernel's output store is a full 128-lane tile.
    w_pad = jnp.zeros((E, C_pad), jnp.float32).at[:, :C].set(fc_w.astype(jnp.float32))
    b_pad = jnp.zeros((1, C_pad), jnp.float32).at[:, :C].set(
        fc_b.reshape(1, C).astype(jnp.float32))

    kernel = _make_kernel(_TB, S)

    out = pl.pallas_call(
        kernel,
        out_shape=jax.ShapeDtypeStruct((B_pad, C_pad), jnp.float32),
        grid_spec=pltpu.PrefetchScalarGridSpec(
            num_scalar_prefetch=1,
            grid=(B_pad // _TB,),
            in_specs=[
                pl.BlockSpec(memory_space=pl.ANY),                 # embedding table stays in HBM
                pl.BlockSpec((E, C_pad), lambda b, ids: (0, 0)),   # fc weight (padded)
                pl.BlockSpec((1, C_pad), lambda b, ids: (0, 0)),   # fc bias   (padded)
            ],
            out_specs=pl.BlockSpec((_TB, C_pad), lambda b, ids: (b, 0)),
            scratch_shapes=[
                pltpu.VMEM((2, 1, E), jnp.float32),                # double-buffered gathered row
                pltpu.SemaphoreType.DMA((2,)),
                pltpu.VMEM((_TB, E), jnp.float32),                 # per-row embedding sums
            ],
        ),
        compiler_params=pltpu.CompilerParams(
            dimension_semantics=("parallel",)),                    # v7x: batch blocks over both TCs
    )(ids, emb_table.astype(jnp.float32), w_pad, b_pad)

    return out[:B, :C]


if __name__ == "__main__":
    # Small, deterministic problem sizes consistent with the module.
    vocab_size = 128
    embed_dim = 128
    num_class = 3
    batch = 2
    seq = 8

    key = jax.random.PRNGKey(0)
    k_ids, k_emb, k_w, k_b = jax.random.split(key, 4)

    text = jax.random.randint(k_ids, (batch, seq), 0, vocab_size, dtype=jnp.int32)
    emb_table = jax.random.normal(k_emb, (vocab_size, embed_dim), dtype=jnp.float32)
    # nn.Linear(embed_dim, num_class): weight (num_class, embed_dim); we store transposed.
    fc_w = (jax.random.normal(k_w, (num_class, embed_dim), dtype=jnp.float32) * 0.05).T
    fc_b = (jax.random.normal(k_b, (num_class,), dtype=jnp.float32) * 0.05).reshape(1, num_class)

    out = text_classification_forward(text, emb_table, fc_w, fc_b)
    out = jax.block_until_ready(out)

    # Pure-JAX reference for sanity.
    ref = emb_table[text].mean(axis=1) @ fc_w + fc_b
    assert out.shape == (batch, num_class)
    assert jnp.allclose(out, ref, atol=1e-4, rtol=1e-4), (out, ref)

    print("KERNEL_OK")
</pallas_src>

<mosaic_0001>
module attributes {stable_mosaic.version = 11 : i64} {
  func.func @kernel(%arg0: i32, %arg1: memref<64xi32, #tpu.memory_space<smem>>, %arg2: memref<128x128xf32, #tpu.memory_space<any>>, %arg3: memref<128x128xf32, #tpu.memory_space<vmem>>, %arg4: memref<1x128xf32, #tpu.memory_space<vmem>>, %arg5: memref<8x128xf32, #tpu.memory_space<vmem>>, %arg6: memref<2x1x128xf32, #tpu.memory_space<vmem>>, %arg7: memref<2x!tpu.dma_semaphore, #tpu.memory_space<semaphore_mem>>, %arg8: memref<8x128xf32, #tpu.memory_space<vmem>>) attributes {dimension_semantics = [#tpu.dimension_semantics<parallel>], iteration_bounds = array<i64: 1>, scalar_prefetch = 1 : i64, scratch_operands = 3 : i64, tpu.core_type = #tpu.core_type<tc>, window_params = [{}, {pipeline_mode = #tpu.pipeline_mode<synchronous>, transform_indices = @transform_1, window_bounds = array<i64: 128, 128>}, {pipeline_mode = #tpu.pipeline_mode<synchronous>, transform_indices = @transform_2, window_bounds = array<i64: 1, 128>}, {transform_indices = @transform_3, window_bounds = array<i64: 8, 128>}]} {
    %c64_i32 = arith.constant 64 : i32
    %0 = arith.muli %arg0, %c64_i32 : i32
    %cst = arith.constant 0.000000e+00 : f32
    %1 = vector.broadcast %cst : f32 to vector<8x128xf32>
    %c0 = arith.constant 0 : index
    %c0_0 = arith.constant 0 : index
    %2 = vector.load %arg8[%c0, %c0_0] : memref<8x128xf32, #tpu.memory_space<vmem>>, vector<8x128xf32>
    tpu.vector_store %arg8[%c0, %c0_0], %1 {strides = array<i32>} : memref<8x128xf32, #tpu.memory_space<vmem>>, vector<8x128xf32>,
    %c0_i32 = arith.constant 0 : i32
    %3 = arith.addi %0, %c0_i32 : i32
    %c0_i32_1 = arith.constant 0 : i32
    %4 = arith.addi %3, %c0_i32_1 : i32
    %5 = arith.index_cast %4 : i32 to index
    %6 = memref.load %arg1[%5] : memref<64xi32, #tpu.memory_space<smem>>
    %c0_i32_2 = arith.constant 0 : i32
    %c127_i32 = arith.constant 127 : i32
    %7 = arith.maxsi %c0_i32_2, %6 : i32
    %8 = arith.minsi %c127_i32, %7 : i32
    %c0_i32_3 = arith.constant 0 : i32
    %c0_i32_4 = arith.constant 0 : i32
    %c0_i32_5 = arith.constant 0 : i32
    %9 = tpu.memref_slice %arg2[%8, %c0_i32_5] : memref<128x128xf32, #tpu.memory_space<any>> -> memref<1x128xf32, #tpu.memory_space<any>>
    %c0_i32_6 = arith.constant 0 : i32
    %c0_i32_7 = arith.constant 0 : i32
    %10 = tpu.memref_slice %arg6[%c0_i32_3, %c0_i32_6, %c0_i32_7] : memref<2x1x128xf32, #tpu.memory_space<vmem>> -> memref<1x1x128xf32, #tpu.memory_space<vmem>>
    %11 = tpu.memref_squeeze %10 : memref<1x1x128xf32, #tpu.memory_space<vmem>> -> memref<1x128xf32, #tpu.memory_space<vmem>>
    %12 = tpu.memref_slice %arg7[%c0_i32_4] : memref<2x!tpu.dma_semaphore, #tpu.memory_space<semaphore_mem>> -> memref<1x!tpu.dma_semaphore, #tpu.memory_space<semaphore_mem>>
    %13 = tpu.memref_squeeze %12 : memref<1x!tpu.dma_semaphore, #tpu.memory_space<semaphore_mem>> -> memref<!tpu.dma_semaphore, #tpu.memory_space<semaphore_mem>>
    tpu.enqueue_dma source(%9 : memref<1x128xf32, #tpu.memory_space<any>>) target(%11 : memref<1x128xf32, #tpu.memory_space<vmem>>) target_semaphore(%13 : memref<!tpu.dma_semaphore, #tpu.memory_space<semaphore_mem>>)
    %c0_i32_8 = arith.constant 0 : i32
    %c8_i32 = arith.constant 8 : i32
    %14 = arith.addi %c0_i32_8, %c8_i32 : i32
    %c1_i32 = arith.constant 1 : i32
    scf.for %arg9 = %c0_i32_8 to %14 step %c1_i32  : i32 {
      %c1_i32_105 = arith.constant 1 : i32
      %108 = arith.muli %arg9, %c1_i32_105 : i32
      %c0_i32_106 = arith.constant 0 : i32
      %109 = arith.addi %c0_i32_106, %108 : i32
      %c2_i32 = arith.constant 2 : i32
      %c0_i32_107 = arith.constant 0 : i32
      %110 = arith.cmpi eq, %c2_i32, %c0_i32_107 : i32
      %c1_i32_108 = arith.constant 1 : i32
      %111 = arith.select %110, %c1_i32_108, %c2_i32 : i32
      %112 = arith.remsi %109, %111 : i32
      %c0_i32_109 = arith.constant 0 : i32
      %113 = arith.cmpi ne, %112, %c0_i32_109 : i32
      %c0_i32_110 = arith.constant 0 : i32
      %114 = arith.cmpi slt, %112, %c0_i32_110 : i32
      %c0_i32_111 = arith.constant 0 : i32
      %115 = arith.cmpi slt, %111, %c0_i32_111 : i32
      %116 = arith.xori %114, %115 : i1
      %117 = arith.andi %116, %113 : i1
      %118 = arith.addi %112, %111 : i32
      %119 = arith.select %117, %118, %112 : i32
      %c0_i32_112 = arith.constant 0 : i32
      %c0_i32_113 = arith.constant 0 : i32
      %120 = tpu.memref_slice %arg2[%c0_i32_112, %c0_i32_113] : memref<128x128xf32, #tpu.memory_space<any>> -> memref<1x128xf32, #tpu.memory_space<any>>
      %c0_i32_114 = arith.constant 0 : i32
      %c0_i32_115 = arith.constant 0 : i32
      %121 = tpu.memref_slice %arg6[%119, %c0_i32_114, %c0_i32_115] : memref<2x1x128xf32, #tpu.memory_space<vmem>> -> memref<1x1x128xf32, #tpu.memory_space<vmem>>
      %122 = tpu.memref_squeeze %121 : memref<1x1x128xf32, #tpu.memory_space<vmem>> -> memref<1x128xf32, #tpu.memory_space<vmem>>
      %123 = tpu.memref_slice %arg7[%119] : memref<2x!tpu.dma_semaphore, #tpu.memory_space<semaphore_mem>> -> memref<1x!tpu.dma_semaphore, #tpu.memory_space<semaphore_mem>>
      %124 = tpu.memref_squeeze %123 : memref<1x!tpu.dma_semaphore, #tpu.memory_space<semaphore_mem>> -> memref<!tpu.dma_semaphore, #tpu.memory_space<semaphore_mem>>
      tpu.wait_dma2 semaphore(%124 : memref<!tpu.dma_semaphore, #tpu.memory_space<semaphore_mem>>) src(%120 : memref<1x128xf32, #tpu.memory_space<any>>) dst(%122 : memref<1x128xf32, #tpu.memory_space<vmem>>)
      %c1_i32_116 = arith.constant 1 : i32
      %125 = arith.addi %109, %c1_i32_116 : i32
      %c8_i32_117 = arith.constant 8 : i32
      %126 = arith.cmpi slt, %125, %c8_i32_117 : i32
      %127 = arith.extui %126 : i1 to i32
      %c0_i32_118 = arith.constant 0 : i32
      %128 = arith.cmpi ne, %127, %c0_i32_118 : i32
      scf.if %128 {
        %c1_i32_125 = arith.constant 1 : i32
        %135 = arith.addi %109, %c1_i32_125 : i32
        %c1_i32_126 = arith.constant 1 : i32
        %136 = arith.subi %c1_i32_126, %119 : i32
        %c0_i32_127 = arith.constant 0 : i32
        %137 = arith.addi %0, %c0_i32_127 : i32
        %138 = arith.addi %137, %135 : i32
        %139 = arith.index_cast %138 : i32 to index
        %140 = memref.load %arg1[%139] : memref<64xi32, #tpu.memory_space<smem>>
        %c0_i32_128 = arith.constant 0 : i32
        %c127_i32_129 = arith.constant 127 : i32
        %141 = arith.maxsi %c0_i32_128, %140 : i32
        %142 = arith.minsi %c127_i32_129, %141 : i32
        %c0_i32_130 = arith.constant 0 : i32
        %143 = tpu.memref_slice %arg2[%142, %c0_i32_130] : memref<128x128xf32, #tpu.memory_space<any>> -> memref<1x128xf32, #tpu.memory_space<any>>
        %c0_i32_131 = arith.constant 0 : i32
        %c0_i32_132 = arith.constant 0 : i32
        %144 = tpu.memref_slice %arg6[%136, %c0_i32_131, %c0_i32_132] : memref<2x1x128xf32, #tpu.memory_space<vmem>> -> memref<1x1x128xf32, #tpu.memory_space<vmem>>
        %145 = tpu.memref_squeeze %144 : memref<1x1x128xf32, #tpu.memory_space<vmem>> -> memref<1x128xf32, #tpu.memory_space<vmem>>
        %146 = tpu.memref_slice %arg7[%136] : memref<2x!tpu.dma_semaphore, #tpu.memory_space<semaphore_mem>> -> memref<1x!tpu.dma_semaphore, #tpu.memory_space<semaphore_mem>>
        %147 = tpu.memref_squeeze %146 : memref<1x!tpu.dma_semaphore, #tpu.memory_space<semaphore_mem>> -> memref<!tpu.dma_semaphore, #tpu.memory_space<semaphore_mem>>
        tpu.enqueue_dma source(%143 : memref<1x128xf32, #tpu.memory_space<any>>) target(%145 : memref<1x128xf32, #tpu.memory_space<vmem>>) target_semaphore(%147 : memref<!tpu.dma_semaphore, #tpu.memory_space<semaphore_mem>>)
      } else {
      }
      %c0_119 = arith.constant 0 : index
      %c0_120 = arith.constant 0 : index
      %129 = vector.load %arg8[%c0_119, %c0_120] : memref<8x128xf32, #tpu.memory_space<vmem>>, vector<1x128xf32>
      %130 = arith.index_cast %119 : i32 to index
      %c0_121 = arith.constant 0 : index
      %c0_122 = arith.constant 0 : index
      %131 = vector.load %arg6[%130, %c0_121, %c0_122] : memref<2x1x128xf32, #tpu.memory_space<vmem>>, vector<1x1x128xf32>
      %132 = vector.shape_cast %131 : vector<1x1x128xf32> to vector<1x128xf32>
      %133 = arith.addf %129, %132 : vector<1x128xf32>
      %c0_123 = arith.constant 0 : index
      %c0_124 = arith.constant 0 : index
      %134 = vector.load %arg8[%c0_123, %c0_124] : memref<8x128xf32, #tpu.memory_space<vmem>>, vector<1x128xf32>
      tpu.vector_store %arg8[%c0_123, %c0_124], %133 {strides = array<i32>} : memref<8x128xf32, #tpu.memory_space<vmem>>, vector<1x128xf32>,
    }
    %c8_i32_9 = arith.constant 8 : i32
    %c8_i32_10 = arith.constant 8 : i32
    %15 = arith.addi %0, %c8_i32_10 : i32
    %c0_i32_11 = arith.constant 0 : i32
    %16 = arith.addi %15, %c0_i32_11 : i32
    %17 = arith.index_cast %16 : i32 to index
    %18 = memref.load %arg1[%17] : memref<64xi32, #tpu.memory_space<smem>>
    %c0_i32_12 = arith.constant 0 : i32
    %c127_i32_13 = arith.constant 127 : i32
    %19 = arith.maxsi %c0_i32_12, %18 : i32
    %20 = arith.minsi %c127_i32_13, %19 : i32
    %c0_i32_14 = arith.constant 0 : i32
    %c0_i32_15 = arith.constant 0 : i32
    %c0_i32_16 = arith.constant 0 : i32
    %21 = tpu.memref_slice %arg2[%20, %c0_i32_16] : memref<128x128xf32, #tpu.memory_space<any>> -> memref<1x128xf32, #tpu.memory_space<any>>
    %c0_i32_17 = arith.constant 0 : i32
    %c0_i32_18 = arith.constant 0 : i32
    %22 = tpu.memref_slice %arg6[%c0_i32_14, %c0_i32_17, %c0_i32_18] : memref<2x1x128xf32, #tpu.memory_space<vmem>> -> memref<1x1x128xf32, #tpu.memory_space<vmem>>
    %23 = tpu.memref_squeeze %22 : memref<1x1x128xf32, #tpu.memory_space<vmem>> -> memref<1x128xf32, #tpu.memory_space<vmem>>
    %24 = tpu.memref_slice %arg7[%c0_i32_15] : memref<2x!tpu.dma_semaphore, #tpu.memory_space<semaphore_mem>> -> memref<1x!tpu.dma_semaphore, #tpu.memory_space<semaphore_mem>>
    %25 = tpu.memref_squeeze %24 : memref<1x!tpu.dma_semaphore, #tpu.memory_space<semaphore_mem>> -> memref<!tpu.dma_semaphore, #tpu.memory_space<semaphore_mem>>
    tpu.enqueue_dma source(%21 : memref<1x128xf32, #tpu.memory_space<any>>) target(%23 : memref<1x128xf32, #tpu.memory_space<vmem>>) target_semaphore(%25 : memref<!tpu.dma_semaphore, #tpu.memory_space<semaphore_mem>>)
    %c0_i32_19 = arith.constant 0 : i32
    %c8_i32_20 = arith.constant 8 : i32
    %26 = arith.addi %c0_i32_19, %c8_i32_20 : i32
    %c1_i32_21 = arith.constant 1 : i32
    scf.for %arg9 = %c0_i32_19 to %26 step %c1_i32_21  : i32 {
      %c1_i32_105 = arith.constant 1 : i32
      %108 = arith.muli %arg9, %c1_i32_105 : i32
      %c0_i32_106 = arith.constant 0 : i32
      %109 = arith.addi %c0_i32_106, %108 : i32
      %c2_i32 = arith.constant 2 : i32
      %c0_i32_107 = arith.constant 0 : i32
      %110 = arith.cmpi eq, %c2_i32, %c0_i32_107 : i32
      %c1_i32_108 = arith.constant 1 : i32
      %111 = arith.select %110, %c1_i32_108, %c2_i32 : i32
      %112 = arith.remsi %109, %111 : i32
      %c0_i32_109 = arith.constant 0 : i32
      %113 = arith.cmpi ne, %112, %c0_i32_109 : i32
      %c0_i32_110 = arith.constant 0 : i32
      %114 = arith.cmpi slt, %112, %c0_i32_110 : i32
      %c0_i32_111 = arith.constant 0 : i32
      %115 = arith.cmpi slt, %111, %c0_i32_111 : i32
      %116 = arith.xori %114, %115 : i1
      %117 = arith.andi %116, %113 : i1
      %118 = arith.addi %112, %111 : i32
      %119 = arith.select %117, %118, %112 : i32
      %c0_i32_112 = arith.constant 0 : i32
      %c0_i32_113 = arith.constant 0 : i32
      %120 = tpu.memref_slice %arg2[%c0_i32_112, %c0_i32_113] : memref<128x128xf32, #tpu.memory_space<any>> -> memref<1x128xf32, #tpu.memory_space<any>>
      %c0_i32_114 = arith.constant 0 : i32
      %c0_i32_115 = arith.constant 0 : i32
      %121 = tpu.memref_slice %arg6[%119, %c0_i32_114, %c0_i32_115] : memref<2x1x128xf32, #tpu.memory_space<vmem>> -> memref<1x1x128xf32, #tpu.memory_space<vmem>>
      %122 = tpu.memref_squeeze %121 : memref<1x1x128xf32, #tpu.memory_space<vmem>> -> memref<1x128xf32, #tpu.memory_space<vmem>>
      %123 = tpu.memref_slice %arg7[%119] : memref<2x!tpu.dma_semaphore, #tpu.memory_space<semaphore_mem>> -> memref<1x!tpu.dma_semaphore, #tpu.memory_space<semaphore_mem>>
      %124 = tpu.memref_squeeze %123 : memref<1x!tpu.dma_semaphore, #tpu.memory_space<semaphore_mem>> -> memref<!tpu.dma_semaphore, #tpu.memory_space<semaphore_mem>>
      tpu.wait_dma2 semaphore(%124 : memref<!tpu.dma_semaphore, #tpu.memory_space<semaphore_mem>>) src(%120 : memref<1x128xf32, #tpu.memory_space<any>>) dst(%122 : memref<1x128xf32, #tpu.memory_space<vmem>>)
      %c1_i32_116 = arith.constant 1 : i32
      %125 = arith.addi %109, %c1_i32_116 : i32
      %c8_i32_117 = arith.constant 8 : i32
      %126 = arith.cmpi slt, %125, %c8_i32_117 : i32
      %127 = arith.extui %126 : i1 to i32
      %c0_i32_118 = arith.constant 0 : i32
      %128 = arith.cmpi ne, %127, %c0_i32_118 : i32
      scf.if %128 {
        %c1_i32_124 = arith.constant 1 : i32
        %135 = arith.addi %109, %c1_i32_124 : i32
        %c1_i32_125 = arith.constant 1 : i32
        %136 = arith.subi %c1_i32_125, %119 : i32
        %c8_i32_126 = arith.constant 8 : i32
        %137 = arith.addi %0, %c8_i32_126 : i32
        %138 = arith.addi %137, %135 : i32
        %139 = arith.index_cast %138 : i32 to index
        %140 = memref.load %arg1[%139] : memref<64xi32, #tpu.memory_space<smem>>
        %c0_i32_127 = arith.constant 0 : i32
        %c127_i32_128 = arith.constant 127 : i32
        %141 = arith.maxsi %c0_i32_127, %140 : i32
        %142 = arith.minsi %c127_i32_128, %141 : i32
        %c0_i32_129 = arith.constant 0 : i32
        %143 = tpu.memref_slice %arg2[%142, %c0_i32_129] : memref<128x128xf32, #tpu.memory_space<any>> -> memref<1x128xf32, #tpu.memory_space<any>>
        %c0_i32_130 = arith.constant 0 : i32
        %c0_i32_131 = arith.constant 0 : i32
        %144 = tpu.memref_slice %arg6[%136, %c0_i32_130, %c0_i32_131] : memref<2x1x128xf32, #tpu.memory_space<vmem>> -> memref<1x1x128xf32, #tpu.memory_space<vmem>>
        %145 = tpu.memref_squeeze %144 : memref<1x1x128xf32, #tpu.memory_space<vmem>> -> memref<1x128xf32, #tpu.memory_space<vmem>>
        %146 = tpu.memref_slice %arg7[%136] : memref<2x!tpu.dma_semaphore, #tpu.memory_space<semaphore_mem>> -> memref<1x!tpu.dma_semaphore, #tpu.memory_space<semaphore_mem>>
        %147 = tpu.memref_squeeze %146 : memref<1x!tpu.dma_semaphore, #tpu.memory_space<semaphore_mem>> -> memref<!tpu.dma_semaphore, #tpu.memory_space<semaphore_mem>>
        tpu.enqueue_dma source(%143 : memref<1x128xf32, #tpu.memory_space<any>>) target(%145 : memref<1x128xf32, #tpu.memory_space<vmem>>) target_semaphore(%147 : memref<!tpu.dma_semaphore, #tpu.memory_space<semaphore_mem>>)
      } else {
      }
      %c1 = arith.constant 1 : index
      %c0_119 = arith.constant 0 : index
      %129 = vector.load %arg8[%c1, %c0_119] : memref<8x128xf32, #tpu.memory_space<vmem>>, vector<1x128xf32>
      %130 = arith.index_cast %119 : i32 to index
      %c0_120 = arith.constant 0 : index
      %c0_121 = arith.constant 0 : index
      %131 = vector.load %arg6[%130, %c0_120, %c0_121] : memref<2x1x128xf32, #tpu.memory_space<vmem>>, vector<1x1x128xf32>
      %132 = vector.shape_cast %131 : vector<1x1x128xf32> to vector<1x128xf32>
      %133 = arith.addf %129, %132 : vector<1x128xf32>
      %c1_122 = arith.constant 1 : index
      %c0_123 = arith.constant 0 : index
      %134 = vector.load %arg8[%c1_122, %c0_123] : memref<8x128xf32, #tpu.memory_space<vmem>>, vector<1x128xf32>
      tpu.vector_store %arg8[%c1_122, %c0_123], %133 {strides = array<i32>} : memref<8x128xf32, #tpu.memory_space<vmem>>, vector<1x128xf32>,
    }
    %c8_i32_22 = arith.constant 8 : i32
    %c16_i32 = arith.constant 16 : i32
    %27 = arith.addi %0, %c16_i32 : i32
    %c0_i32_23 = arith.constant 0 : i32
    %28 = arith.addi %27, %c0_i32_23 : i32
    %29 = arith.index_cast %28 : i32 to index
    %30 = memref.load %arg1[%29] : memref<64xi32, #tpu.memory_space<smem>>
    %c0_i32_24 = arith.constant 0 : i32
    %c127_i32_25 = arith.constant 127 : i32
    %31 = arith.maxsi %c0_i32_24, %30 : i32
    %32 = arith.minsi %c127_i32_25, %31 : i32
    %c0_i32_26 = arith.constant 0 : i32
    %c0_i32_27 = arith.constant 0 : i32
    %c0_i32_28 = arith.constant 0 : i32
    %33 = tpu.memref_slice %arg2[%32, %c0_i32_28] : memref<128x128xf32, #tpu.memory_space<any>> -> memref<1x128xf32, #tpu.memory_space<any>>
    %c0_i32_29 = arith.constant 0 : i32
    %c0_i32_30 = arith.constant 0 : i32
    %34 = tpu.memref_slice %arg6[%c0_i32_26, %c0_i32_29, %c0_i32_30] : memref<2x1x128xf32, #tpu.memory_space<vmem>> -> memref<1x1x128xf32, #tpu.memory_space<vmem>>
    %35 = tpu.memref_squeeze %34 : memref<1x1x128xf32, #tpu.memory_space<vmem>> -> memref<1x128xf32, #tpu.memory_space<vmem>>
    %36 = tpu.memref_slice %arg7[%c0_i32_27] : memref<2x!tpu.dma_semaphore, #tpu.memory_space<semaphore_mem>> -> memref<1x!tpu.dma_semaphore, #tpu.memory_space<semaphore_mem>>
    %37 = tpu.memref_squeeze %36 : memref<1x!tpu.dma_semaphore, #tpu.memory_space<semaphore_mem>> -> memref<!tpu.dma_semaphore, #tpu.memory_space<semaphore_mem>>
    tpu.enqueue_dma source(%33 : memref<1x128xf32, #tpu.memory_space<any>>) target(%35 : memref<1x128xf32, #tpu.memory_space<vmem>>) target_semaphore(%37 : memref<!tpu.dma_semaphore, #tpu.memory_space<semaphore_mem>>)
    %c0_i32_31 = arith.constant 0 : i32
    %c8_i32_32 = arith.constant 8 : i32
    %38 = arith.addi %c0_i32_31, %c8_i32_32 : i32
    %c1_i32_33 = arith.constant 1 : i32
    scf.for %arg9 = %c0_i32_31 to %38 step %c1_i32_33  : i32 {
      %c1_i32_105 = arith.constant 1 : i32
      %108 = arith.muli %arg9, %c1_i32_105 : i32
      %c0_i32_106 = arith.constant 0 : i32
      %109 = arith.addi %c0_i32_106, %108 : i32
      %c2_i32 = arith.constant 2 : i32
      %c0_i32_107 = arith.constant 0 : i32
      %110 = arith.cmpi eq, %c2_i32, %c0_i32_107 : i32
      %c1_i32_108 = arith.constant 1 : i32
      %111 = arith.select %110, %c1_i32_108, %c2_i32 : i32
      %112 = arith.remsi %109, %111 : i32
      %c0_i32_109 = arith.constant 0 : i32
      %113 = arith.cmpi ne, %112, %c0_i32_109 : i32
      %c0_i32_110 = arith.constant 0 : i32
      %114 = arith.cmpi slt, %112, %c0_i32_110 : i32
      %c0_i32_111 = arith.constant 0 : i32
      %115 = arith.cmpi slt, %111, %c0_i32_111 : i32
      %116 = arith.xori %114, %115 : i1
      %117 = arith.andi %116, %113 : i1
      %118 = arith.addi %112, %111 : i32
      %119 = arith.select %117, %118, %112 : i32
      %c0_i32_112 = arith.constant 0 : i32
      %c0_i32_113 = arith.constant 0 : i32
      %120 = tpu.memref_slice %arg2[%c0_i32_112, %c0_i32_113] : memref<128x128xf32, #tpu.memory_space<any>> -> memref<1x128xf32, #tpu.memory_space<any>>
      %c0_i32_114 = arith.constant 0 : i32
      %c0_i32_115 = arith.constant 0 : i32
      %121 = tpu.memref_slice %arg6[%119, %c0_i32_114, %c0_i32_115] : memref<2x1x128xf32, #tpu.memory_space<vmem>> -> memref<1x1x128xf32, #tpu.memory_space<vmem>>
      %122 = tpu.memref_squeeze %121 : memref<1x1x128xf32, #tpu.memory_space<vmem>> -> memref<1x128xf32, #tpu.memory_space<vmem>>
      %123 = tpu.memref_slice %arg7[%119] : memref<2x!tpu.dma_semaphore, #tpu.memory_space<semaphore_mem>> -> memref<1x!tpu.dma_semaphore, #tpu.memory_space<semaphore_mem>>
      %124 = tpu.memref_squeeze %123 : memref<1x!tpu.dma_semaphore, #tpu.memory_space<semaphore_mem>> -> memref<!tpu.dma_semaphore, #tpu.memory_space<semaphore_mem>>
      tpu.wait_dma2 semaphore(%124 : memref<!tpu.dma_semaphore, #tpu.memory_space<semaphore_mem>>) src(%120 : memref<1x128xf32, #tpu.memory_space<any>>) dst(%122 : memref<1x128xf32, #tpu.memory_space<vmem>>)
      %c1_i32_116 = arith.constant 1 : i32
      %125 = arith.addi %109, %c1_i32_116 : i32
      %c8_i32_117 = arith.constant 8 : i32
      %126 = arith.cmpi slt, %125, %c8_i32_117 : i32
      %127 = arith.extui %126 : i1 to i32
      %c0_i32_118 = arith.constant 0 : i32
      %128 = arith.cmpi ne, %127, %c0_i32_118 : i32
      scf.if %128 {
        %c1_i32_124 = arith.constant 1 : i32
        %135 = arith.addi %109, %c1_i32_124 : i32
        %c1_i32_125 = arith.constant 1 : i32
        %136 = arith.subi %c1_i32_125, %119 : i32
        %c16_i32_126 = arith.constant 16 : i32
        %137 = arith.addi %0, %c16_i32_126 : i32
        %138 = arith.addi %137, %135 : i32
        %139 = arith.index_cast %138 : i32 to index
        %140 = memref.load %arg1[%139] : memref<64xi32, #tpu.memory_space<smem>>
        %c0_i32_127 = arith.constant 0 : i32
        %c127_i32_128 = arith.constant 127 : i32
        %141 = arith.maxsi %c0_i32_127, %140 : i32
        %142 = arith.minsi %c127_i32_128, %141 : i32
        %c0_i32_129 = arith.constant 0 : i32
        %143 = tpu.memref_slice %arg2[%142, %c0_i32_129] : memref<128x128xf32, #tpu.memory_space<any>> -> memref<1x128xf32, #tpu.memory_space<any>>
        %c0_i32_130 = arith.constant 0 : i32
        %c0_i32_131 = arith.constant 0 : i32
        %144 = tpu.memref_slice %arg6[%136, %c0_i32_130, %c0_i32_131] : memref<2x1x128xf32, #tpu.memory_space<vmem>> -> memref<1x1x128xf32, #tpu.memory_space<vmem>>
        %145 = tpu.memref_squeeze %144 : memref<1x1x128xf32, #tpu.memory_space<vmem>> -> memref<1x128xf32, #tpu.memory_space<vmem>>
        %146 = tpu.memref_slice %arg7[%136] : memref<2x!tpu.dma_semaphore, #tpu.memory_space<semaphore_mem>> -> memref<1x!tpu.dma_semaphore, #tpu.memory_space<semaphore_mem>>
        %147 = tpu.memref_squeeze %146 : memref<1x!tpu.dma_semaphore, #tpu.memory_space<semaphore_mem>> -> memref<!tpu.dma_semaphore, #tpu.memory_space<semaphore_mem>>
        tpu.enqueue_dma source(%143 : memref<1x128xf32, #tpu.memory_space<any>>) target(%145 : memref<1x128xf32, #tpu.memory_space<vmem>>) target_semaphore(%147 : memref<!tpu.dma_semaphore, #tpu.memory_space<semaphore_mem>>)
      } else {
      }
      %c2 = arith.constant 2 : index
      %c0_119 = arith.constant 0 : index
      %129 = vector.load %arg8[%c2, %c0_119] : memref<8x128xf32, #tpu.memory_space<vmem>>, vector<1x128xf32>
      %130 = arith.index_cast %119 : i32 to index
      %c0_120 = arith.constant 0 : index
      %c0_121 = arith.constant 0 : index
      %131 = vector.load %arg6[%130, %c0_120, %c0_121] : memref<2x1x128xf32, #tpu.memory_space<vmem>>, vector<1x1x128xf32>
      %132 = vector.shape_cast %131 : vector<1x1x128xf32> to vector<1x128xf32>
      %133 = arith.addf %129, %132 : vector<1x128xf32>
      %c2_122 = arith.constant 2 : index
      %c0_123 = arith.constant 0 : index
      %134 = vector.load %arg8[%c2_122, %c0_123] : memref<8x128xf32, #tpu.memory_space<vmem>>, vector<1x128xf32>
      tpu.vector_store %arg8[%c2_122, %c0_123], %133 {strides = array<i32>} : memref<8x128xf32, #tpu.memory_space<vmem>>, vector<1x128xf32>,
    }
    %c8_i32_34 = arith.constant 8 : i32
    %c24_i32 = arith.constant 24 : i32
    %39 = arith.addi %0, %c24_i32 : i32
    %c0_i32_35 = arith.constant 0 : i32
    %40 = arith.addi %39, %c0_i32_35 : i32
    %41 = arith.index_cast %40 : i32 to index
    %42 = memref.load %arg1[%41] : memref<64xi32, #tpu.memory_space<smem>>
    %c0_i32_36 = arith.constant 0 : i32
    %c127_i32_37 = arith.constant 127 : i32
    %43 = arith.maxsi %c0_i32_36, %42 : i32
    %44 = arith.minsi %c127_i32_37, %43 : i32
    %c0_i32_38 = arith.constant 0 : i32
    %c0_i32_39 = arith.constant 0 : i32
    %c0_i32_40 = arith.constant 0 : i32
    %45 = tpu.memref_slice %arg2[%44, %c0_i32_40] : memref<128x128xf32, #tpu.memory_space<any>> -> memref<1x128xf32, #tpu.memory_space<any>>
    %c0_i32_41 = arith.constant 0 : i32
    %c0_i32_42 = arith.constant 0 : i32
    %46 = tpu.memref_slice %arg6[%c0_i32_38, %c0_i32_41, %c0_i32_42] : memref<2x1x128xf32, #tpu.memory_space<vmem>> -> memref<1x1x128xf32, #tpu.memory_space<vmem>>
    %47 = tpu.memref_squeeze %46 : memref<1x1x128xf32, #tpu.memory_space<vmem>> -> memref<1x128xf32, #tpu.memory_space<vmem>>
    %48 = tpu.memref_slice %arg7[%c0_i32_39] : memref<2x!tpu.dma_semaphore, #tpu.memory_space<semaphore_mem>> -> memref<1x!tpu.dma_semaphore, #tpu.memory_space<semaphore_mem>>
    %49 = tpu.memref_squeeze %48 : memref<1x!tpu.dma_semaphore, #tpu.memory_space<semaphore_mem>> -> memref<!tpu.dma_semaphore, #tpu.memory_space<semaphore_mem>>
    tpu.enqueue_dma source(%45 : memref<1x128xf32, #tpu.memory_space<any>>) target(%47 : memref<1x128xf32, #tpu.memory_space<vmem>>) target_semaphore(%49 : memref<!tpu.dma_semaphore, #tpu.memory_space<semaphore_mem>>)
    %c0_i32_43 = arith.constant 0 : i32
    %c8_i32_44 = arith.constant 8 : i32
    %50 = arith.addi %c0_i32_43, %c8_i32_44 : i32
    %c1_i32_45 = arith.constant 1 : i32
    scf.for %arg9 = %c0_i32_43 to %50 step %c1_i32_45  : i32 {
      %c1_i32_105 = arith.constant 1 : i32
      %108 = arith.muli %arg9, %c1_i32_105 : i32
      %c0_i32_106 = arith.constant 0 : i32
      %109 = arith.addi %c0_i32_106, %108 : i32
      %c2_i32 = arith.constant 2 : i32
      %c0_i32_107 = arith.constant 0 : i32
      %110 = arith.cmpi eq, %c2_i32, %c0_i32_107 : i32
      %c1_i32_108 = arith.constant 1 : i32
      %111 = arith.select %110, %c1_i32_108, %c2_i32 : i32
      %112 = arith.remsi %109, %111 : i32
      %c0_i32_109 = arith.constant 0 : i32
      %113 = arith.cmpi ne, %112, %c0_i32_109 : i32
      %c0_i32_110 = arith.constant 0 : i32
      %114 = arith.cmpi slt, %112, %c0_i32_110 : i32
      %c0_i32_111 = arith.constant 0 : i32
      %115 = arith.cmpi slt, %111, %c0_i32_111 : i32
      %116 = arith.xori %114, %115 : i1
      %117 = arith.andi %116, %113 : i1
      %118 = arith.addi %112, %111 : i32
      %119 = arith.select %117, %118, %112 : i32
      %c0_i32_112 = arith.constant 0 : i32
      %c0_i32_113 = arith.constant 0 : i32
      %120 = tpu.memref_slice %arg2[%c0_i32_112, %c0_i32_113] : memref<128x128xf32, #tpu.memory_space<any>> -> memref<1x128xf32, #tpu.memory_space<any>>
      %c0_i32_114 = arith.constant 0 : i32
      %c0_i32_115 = arith.constant 0 : i32
      %121 = tpu.memref_slice %arg6[%119, %c0_i32_114, %c0_i32_115] : memref<2x1x128xf32, #tpu.memory_space<vmem>> -> memref<1x1x128xf32, #tpu.memory_space<vmem>>
      %122 = tpu.memref_squeeze %121 : memref<1x1x128xf32, #tpu.memory_space<vmem>> -> memref<1x128xf32, #tpu.memory_space<vmem>>
      %123 = tpu.memref_slice %arg7[%119] : memref<2x!tpu.dma_semaphore, #tpu.memory_space<semaphore_mem>> -> memref<1x!tpu.dma_semaphore, #tpu.memory_space<semaphore_mem>>
      %124 = tpu.memref_squeeze %123 : memref<1x!tpu.dma_semaphore, #tpu.memory_space<semaphore_mem>> -> memref<!tpu.dma_semaphore, #tpu.memory_space<semaphore_mem>>
      tpu.wait_dma2 semaphore(%124 : memref<!tpu.dma_semaphore, #tpu.memory_space<semaphore_mem>>) src(%120 : memref<1x128xf32, #tpu.memory_space<any>>) dst(%122 : memref<1x128xf32, #tpu.memory_space<vmem>>)
      %c1_i32_116 = arith.constant 1 : i32
      %125 = arith.addi %109, %c1_i32_116 : i32
      %c8_i32_117 = arith.constant 8 : i32
      %126 = arith.cmpi slt, %125, %c8_i32_117 : i32
      %127 = arith.extui %126 : i1 to i32
      %c0_i32_118 = arith.constant 0 : i32
      %128 = arith.cmpi ne, %127, %c0_i32_118 : i32
      scf.if %128 {
        %c1_i32_124 = arith.constant 1 : i32
        %135 = arith.addi %109, %c1_i32_124 : i32
        %c1_i32_125 = arith.constant 1 : i32
        %136 = arith.subi %c1_i32_125, %119 : i32
        %c24_i32_126 = arith.constant 24 : i32
        %137 = arith.addi %0, %c24_i32_126 : i32
        %138 = arith.addi %137, %135 : i32
        %139 = arith.index_cast %138 : i32 to index
        %140 = memref.load %arg1[%139] : memref<64xi32, #tpu.memory_space<smem>>
        %c0_i32_127 = arith.constant 0 : i32
        %c127_i32_128 = arith.constant 127 : i32
        %141 = arith.maxsi %c0_i32_127, %140 : i32
        %142 = arith.minsi %c127_i32_128, %141 : i32
        %c0_i32_129 = arith.constant 0 : i32
        %143 = tpu.memref_slice %arg2[%142, %c0_i32_129] : memref<128x128xf32, #tpu.memory_space<any>> -> memref<1x128xf32, #tpu.memory_space<any>>
        %c0_i32_130 = arith.constant 0 : i32
        %c0_i32_131 = arith.constant 0 : i32
        %144 = tpu.memref_slice %arg6[%136, %c0_i32_130, %c0_i32_131] : memref<2x1x128xf32, #tpu.memory_space<vmem>> -> memref<1x1x128xf32, #tpu.memory_space<vmem>>
        %145 = tpu.memref_squeeze %144 : memref<1x1x128xf32, #tpu.memory_space<vmem>> -> memref<1x128xf32, #tpu.memory_space<vmem>>
        %146 = tpu.memref_slice %arg7[%136] : memref<2x!tpu.dma_semaphore, #tpu.memory_space<semaphore_mem>> -> memref<1x!tpu.dma_semaphore, #tpu.memory_space<semaphore_mem>>
        %147 = tpu.memref_squeeze %146 : memref<1x!tpu.dma_semaphore, #tpu.memory_space<semaphore_mem>> -> memref<!tpu.dma_semaphore, #tpu.memory_space<semaphore_mem>>
        tpu.enqueue_dma source(%143 : memref<1x128xf32, #tpu.memory_space<any>>) target(%145 : memref<1x128xf32, #tpu.memory_space<vmem>>) target_semaphore(%147 : memref<!tpu.dma_semaphore, #tpu.memory_space<semaphore_mem>>)
      } else {
      }
      %c3 = arith.constant 3 : index
      %c0_119 = arith.constant 0 : index
      %129 = vector.load %arg8[%c3, %c0_119] : memref<8x128xf32, #tpu.memory_space<vmem>>, vector<1x128xf32>
      %130 = arith.index_cast %119 : i32 to index
      %c0_120 = arith.constant 0 : index
      %c0_121 = arith.constant 0 : index
      %131 = vector.load %arg6[%130, %c0_120, %c0_121] : memref<2x1x128xf32, #tpu.memory_space<vmem>>, vector<1x1x128xf32>
      %132 = vector.shape_cast %131 : vector<1x1x128xf32> to vector<1x128xf32>
      %133 = arith.addf %129, %132 : vector<1x128xf32>
      %c3_122 = arith.constant 3 : index
      %c0_123 = arith.constant 0 : index
      %134 = vector.load %arg8[%c3_122, %c0_123] : memref<8x128xf32, #tpu.memory_space<vmem>>, vector<1x128xf32>
      tpu.vector_store %arg8[%c3_122, %c0_123], %133 {strides = array<i32>} : memref<8x128xf32, #tpu.memory_space<vmem>>, vector<1x128xf32>,
    }
    %c8_i32_46 = arith.constant 8 : i32
    %c32_i32 = arith.constant 32 : i32
    %51 = arith.addi %0, %c32_i32 : i32
    %c0_i32_47 = arith.constant 0 : i32
    %52 = arith.addi %51, %c0_i32_47 : i32
    %53 = arith.index_cast %52 : i32 to index
    %54 = memref.load %arg1[%53] : memref<64xi32, #tpu.memory_space<smem>>
    %c0_i32_48 = arith.constant 0 : i32
    %c127_i32_49 = arith.constant 127 : i32
    %55 = arith.maxsi %c0_i32_48, %54 : i32
    %56 = arith.minsi %c127_i32_49, %55 : i32
    %c0_i32_50 = arith.constant 0 : i32
    %c0_i32_51 = arith.constant 0 : i32
    %c0_i32_52 = arith.constant 0 : i32
    %57 = tpu.memref_slice %arg2[%56, %c0_i32_52] : memref<128x128xf32, #tpu.memory_space<any>> -> memref<1x128xf32, #tpu.memory_space<any>>
    %c0_i32_53 = arith.constant 0 : i32
    %c0_i32_54 = arith.constant 0 : i32
    %58 = tpu.memref_slice %arg6[%c0_i32_50, %c0_i32_53, %c0_i32_54] : memref<2x1x128xf32, #tpu.memory_space<vmem>> -> memref<1x1x128xf32, #tpu.memory_space<vmem>>
    %59 = tpu.memref_squeeze %58 : memref<1x1x128xf32, #tpu.memory_space<vmem>> -> memref<1x128xf32, #tpu.memory_space<vmem>>
    %60 = tpu.memref_slice %arg7[%c0_i32_51] : memref<2x!tpu.dma_semaphore, #tpu.memory_space<semaphore_mem>> -> memref<1x!tpu.dma_semaphore, #tpu.memory_space<semaphore_mem>>
    %61 = tpu.memref_squeeze %60 : memref<1x!tpu.dma_semaphore, #tpu.memory_space<semaphore_mem>> -> memref<!tpu.dma_semaphore, #tpu.memory_space<semaphore_mem>>
    tpu.enqueue_dma source(%57 : memref<1x128xf32, #tpu.memory_space<any>>) target(%59 : memref<1x128xf32, #tpu.memory_space<vmem>>) target_semaphore(%61 : memref<!tpu.dma_semaphore, #tpu.memory_space<semaphore_mem>>)
    %c0_i32_55 = arith.constant 0 : i32
    %c8_i32_56 = arith.constant 8 : i32
    %62 = arith.addi %c0_i32_55, %c8_i32_56 : i32
    %c1_i32_57 = arith.constant 1 : i32
    scf.for %arg9 = %c0_i32_55 to %62 step %c1_i32_57  : i32 {
      %c1_i32_105 = arith.constant 1 : i32
      %108 = arith.muli %arg9, %c1_i32_105 : i32
      %c0_i32_106 = arith.constant 0 : i32
      %109 = arith.addi %c0_i32_106, %108 : i32
      %c2_i32 = arith.constant 2 : i32
      %c0_i32_107 = arith.constant 0 : i32
      %110 = arith.cmpi eq, %c2_i32, %c0_i32_107 : i32
      %c1_i32_108 = arith.constant 1 : i32
      %111 = arith.select %110, %c1_i32_108, %c2_i32 : i32
      %112 = arith.remsi %109, %111 : i32
      %c0_i32_109 = arith.constant 0 : i32
      %113 = arith.cmpi ne, %112, %c0_i32_109 : i32
      %c0_i32_110 = arith.constant 0 : i32
      %114 = arith.cmpi slt, %112, %c0_i32_110 : i32
      %c0_i32_111 = arith.constant 0 : i32
      %115 = arith.cmpi slt, %111, %c0_i32_111 : i32
      %116 = arith.xori %114, %115 : i1
      %117 = arith.andi %116, %113 : i1
      %118 = arith.addi %112, %111 : i32
      %119 = arith.select %117, %118, %112 : i32
      %c0_i32_112 = arith.constant 0 : i32
      %c0_i32_113 = arith.constant 0 : i32
      %120 = tpu.memref_slice %arg2[%c0_i32_112, %c0_i32_113] : memref<128x128xf32, #tpu.memory_space<any>> -> memref<1x128xf32, #tpu.memory_space<any>>
      %c0_i32_114 = arith.constant 0 : i32
      %c0_i32_115 = arith.constant 0 : i32
      %121 = tpu.memref_slice %arg6[%119, %c0_i32_114, %c0_i32_115] : memref<2x1x128xf32, #tpu.memory_space<vmem>> -> memref<1x1x128xf32, #tpu.memory_space<vmem>>
      %122 = tpu.memref_squeeze %121 : memref<1x1x128xf32, #tpu.memory_space<vmem>> -> memref<1x128xf32, #tpu.memory_space<vmem>>
      %123 = tpu.memref_slice %arg7[%119] : memref<2x!tpu.dma_semaphore, #tpu.memory_space<semaphore_mem>> -> memref<1x!tpu.dma_semaphore, #tpu.memory_space<semaphore_mem>>
      %124 = tpu.memref_squeeze %123 : memref<1x!tpu.dma_semaphore, #tpu.memory_space<semaphore_mem>> -> memref<!tpu.dma_semaphore, #tpu.memory_space<semaphore_mem>>
      tpu.wait_dma2 semaphore(%124 : memref<!tpu.dma_semaphore, #tpu.memory_space<semaphore_mem>>) src(%120 : memref<1x128xf32, #tpu.memory_space<any>>) dst(%122 : memref<1x128xf32, #tpu.memory_space<vmem>>)
      %c1_i32_116 = arith.constant 1 : i32
      %125 = arith.addi %109, %c1_i32_116 : i32
      %c8_i32_117 = arith.constant 8 : i32
      %126 = arith.cmpi slt, %125, %c8_i32_117 : i32
      %127 = arith.extui %126 : i1 to i32
      %c0_i32_118 = arith.constant 0 : i32
      %128 = arith.cmpi ne, %127, %c0_i32_118 : i32
      scf.if %128 {
        %c1_i32_124 = arith.constant 1 : i32
        %135 = arith.addi %109, %c1_i32_124 : i32
        %c1_i32_125 = arith.constant 1 : i32
        %136 = arith.subi %c1_i32_125, %119 : i32
        %c32_i32_126 = arith.constant 32 : i32
        %137 = arith.addi %0, %c32_i32_126 : i32
        %138 = arith.addi %137, %135 : i32
        %139 = arith.index_cast %138 : i32 to index
        %140 = memref.load %arg1[%139] : memref<64xi32, #tpu.memory_space<smem>>
        %c0_i32_127 = arith.constant 0 : i32
        %c127_i32_128 = arith.constant 127 : i32
        %141 = arith.maxsi %c0_i32_127, %140 : i32
        %142 = arith.minsi %c127_i32_128, %141 : i32
        %c0_i32_129 = arith.constant 0 : i32
        %143 = tpu.memref_slice %arg2[%142, %c0_i32_129] : memref<128x128xf32, #tpu.memory_space<any>> -> memref<1x128xf32, #tpu.memory_space<any>>
        %c0_i32_130 = arith.constant 0 : i32
        %c0_i32_131 = arith.constant 0 : i32
        %144 = tpu.memref_slice %arg6[%136, %c0_i32_130, %c0_i32_131] : memref<2x1x128xf32, #tpu.memory_space<vmem>> -> memref<1x1x128xf32, #tpu.memory_space<vmem>>
        %145 = tpu.memref_squeeze %144 : memref<1x1x128xf32, #tpu.memory_space<vmem>> -> memref<1x128xf32, #tpu.memory_space<vmem>>
        %146 = tpu.memref_slice %arg7[%136] : memref<2x!tpu.dma_semaphore, #tpu.memory_space<semaphore_mem>> -> memref<1x!tpu.dma_semaphore, #tpu.memory_space<semaphore_mem>>
        %147 = tpu.memref_squeeze %146 : memref<1x!tpu.dma_semaphore, #tpu.memory_space<semaphore_mem>> -> memref<!tpu.dma_semaphore, #tpu.memory_space<semaphore_mem>>
        tpu.enqueue_dma source(%143 : memref<1x128xf32, #tpu.memory_space<any>>) target(%145 : memref<1x128xf32, #tpu.memory_space<vmem>>) target_semaphore(%147 : memref<!tpu.dma_semaphore, #tpu.memory_space<semaphore_mem>>)
      } else {
      }
      %c4 = arith.constant 4 : index
      %c0_119 = arith.constant 0 : index
      %129 = vector.load %arg8[%c4, %c0_119] : memref<8x128xf32, #tpu.memory_space<vmem>>, vector<1x128xf32>
      %130 = arith.index_cast %119 : i32 to index
      %c0_120 = arith.constant 0 : index
      %c0_121 = arith.constant 0 : index
      %131 = vector.load %arg6[%130, %c0_120, %c0_121] : memref<2x1x128xf32, #tpu.memory_space<vmem>>, vector<1x1x128xf32>
      %132 = vector.shape_cast %131 : vector<1x1x128xf32> to vector<1x128xf32>
      %133 = arith.addf %129, %132 : vector<1x128xf32>
      %c4_122 = arith.constant 4 : index
      %c0_123 = arith.constant 0 : index
      %134 = vector.load %arg8[%c4_122, %c0_123] : memref<8x128xf32, #tpu.memory_space<vmem>>, vector<1x128xf32>
      tpu.vector_store %arg8[%c4_122, %c0_123], %133 {strides = array<i32>} : memref<8x128xf32, #tpu.memory_space<vmem>>, vector<1x128xf32>,
    }
    %c8_i32_58 = arith.constant 8 : i32
    %c40_i32 = arith.constant 40 : i32
    %63 = arith.addi %0, %c40_i32 : i32
    %c0_i32_59 = arith.constant 0 : i32
    %64 = arith.addi %63, %c0_i32_59 : i32
    %65 = arith.index_cast %64 : i32 to index
    %66 = memref.load %arg1[%65] : memref<64xi32, #tpu.memory_space<smem>>
    %c0_i32_60 = arith.constant 0 : i32
    %c127_i32_61 = arith.constant 127 : i32
    %67 = arith.maxsi %c0_i32_60, %66 : i32
    %68 = arith.minsi %c127_i32_61, %67 : i32
    %c0_i32_62 = arith.constant 0 : i32
    %c0_i32_63 = arith.constant 0 : i32
    %c0_i32_64 = arith.constant 0 : i32
    %69 = tpu.memref_slice %arg2[%68, %c0_i32_64] : memref<128x128xf32, #tpu.memory_space<any>> -> memref<1x128xf32, #tpu.memory_space<any>>
    %c0_i32_65 = arith.constant 0 : i32
    %c0_i32_66 = arith.constant 0 : i32
    %70 = tpu.memref_slice %arg6[%c0_i32_62, %c0_i32_65, %c0_i32_66] : memref<2x1x128xf32, #tpu.memory_space<vmem>> -> memref<1x1x128xf32, #tpu.memory_space<vmem>>
    %71 = tpu.memref_squeeze %70 : memref<1x1x128xf32, #tpu.memory_space<vmem>> -> memref<1x128xf32, #tpu.memory_space<vmem>>
    %72 = tpu.memref_slice %arg7[%c0_i32_63] : memref<2x!tpu.dma_semaphore, #tpu.memory_space<semaphore_mem>> -> memref<1x!tpu.dma_semaphore, #tpu.memory_space<semaphore_mem>>
    %73 = tpu.memref_squeeze %72 : memref<1x!tpu.dma_semaphore, #tpu.memory_space<semaphore_mem>> -> memref<!tpu.dma_semaphore, #tpu.memory_space<semaphore_mem>>
    tpu.enqueue_dma source(%69 : memref<1x128xf32, #tpu.memory_space<any>>) target(%71 : memref<1x128xf32, #tpu.memory_space<vmem>>) target_semaphore(%73 : memref<!tpu.dma_semaphore, #tpu.memory_space<semaphore_mem>>)
    %c0_i32_67 = arith.constant 0 : i32
    %c8_i32_68 = arith.constant 8 : i32
    %74 = arith.addi %c0_i32_67, %c8_i32_68 : i32
    %c1_i32_69 = arith.constant 1 : i32
    scf.for %arg9 = %c0_i32_67 to %74 step %c1_i32_69  : i32 {
      %c1_i32_105 = arith.constant 1 : i32
      %108 = arith.muli %arg9, %c1_i32_105 : i32
      %c0_i32_106 = arith.constant 0 : i32
      %109 = arith.addi %c0_i32_106, %108 : i32
      %c2_i32 = arith.constant 2 : i32
      %c0_i32_107 = arith.constant 0 : i32
      %110 = arith.cmpi eq, %c2_i32, %c0_i32_107 : i32
      %c1_i32_108 = arith.constant 1 : i32
      %111 = arith.select %110, %c1_i32_108, %c2_i32 : i32
      %112 = arith.remsi %109, %111 : i32
      %c0_i32_109 = arith.constant 0 : i32
      %113 = arith.cmpi ne, %112, %c0_i32_109 : i32
      %c0_i32_110 = arith.constant 0 : i32
      %114 = arith.cmpi slt, %112, %c0_i32_110 : i32
      %c0_i32_111 = arith.constant 0 : i32
      %115 = arith.cmpi slt, %111, %c0_i32_111 : i32
      %116 = arith.xori %114, %115 : i1
      %117 = arith.andi %116, %113 : i1
      %118 = arith.addi %112, %111 : i32
      %119 = arith.select %117, %118, %112 : i32
      %c0_i32_112 = arith.constant 0 : i32
      %c0_i32_113 = arith.constant 0 : i32
      %120 = tpu.memref_slice %arg2[%c0_i32_112, %c0_i32_113] : memref<128x128xf32, #tpu.memory_space<any>> -> memref<1x128xf32, #tpu.memory_space<any>>
      %c0_i32_114 = arith.constant 0 : i32
      %c0_i32_115 = arith.constant 0 : i32
      %121 = tpu.memref_slice %arg6[%119, %c0_i32_114, %c0_i32_115] : memref<2x1x128xf32, #tpu.memory_space<vmem>> -> memref<1x1x128xf32, #tpu.memory_space<vmem>>
      %122 = tpu.memref_squeeze %121 : memref<1x1x128xf32, #tpu.memory_space<vmem>> -> memref<1x128xf32, #tpu.memory_space<vmem>>
      %123 = tpu.memref_slice %arg7[%119] : memref<2x!tpu.dma_semaphore, #tpu.memory_space<semaphore_mem>> -> memref<1x!tpu.dma_semaphore, #tpu.memory_space<semaphore_mem>>
      %124 = tpu.memref_squeeze %123 : memref<1x!tpu.dma_semaphore, #tpu.memory_space<semaphore_mem>> -> memref<!tpu.dma_semaphore, #tpu.memory_space<semaphore_mem>>
      tpu.wait_dma2 semaphore(%124 : memref<!tpu.dma_semaphore, #tpu.memory_space<semaphore_mem>>) src(%120 : memref<1x128xf32, #tpu.memory_space<any>>) dst(%122 : memref<1x128xf32, #tpu.memory_space<vmem>>)
      %c1_i32_116 = arith.constant 1 : i32
      %125 = arith.addi %109, %c1_i32_116 : i32
      %c8_i32_117 = arith.constant 8 : i32
      %126 = arith.cmpi slt, %125, %c8_i32_117 : i32
      %127 = arith.extui %126 : i1 to i32
      %c0_i32_118 = arith.constant 0 : i32
      %128 = arith.cmpi ne, %127, %c0_i32_118 : i32
      scf.if %128 {
        %c1_i32_124 = arith.constant 1 : i32
        %135 = arith.addi %109, %c1_i32_124 : i32
        %c1_i32_125 = arith.constant 1 : i32
        %136 = arith.subi %c1_i32_125, %119 : i32
        %c40_i32_126 = arith.constant 40 : i32
        %137 = arith.addi %0, %c40_i32_126 : i32
        %138 = arith.addi %137, %135 : i32
        %139 = arith.index_cast %138 : i32 to index
        %140 = memref.load %arg1[%139] : memref<64xi32, #tpu.memory_space<smem>>
        %c0_i32_127 = arith.constant 0 : i32
        %c127_i32_128 = arith.constant 127 : i32
        %141 = arith.maxsi %c0_i32_127, %140 : i32
        %142 = arith.minsi %c127_i32_128, %141 : i32
        %c0_i32_129 = arith.constant 0 : i32
        %143 = tpu.memref_slice %arg2[%142, %c0_i32_129] : memref<128x128xf32, #tpu.memory_space<any>> -> memref<1x128xf32, #tpu.memory_space<any>>
        %c0_i32_130 = arith.constant 0 : i32
        %c0_i32_131 = arith.constant 0 : i32
        %144 = tpu.memref_slice %arg6[%136, %c0_i32_130, %c0_i32_131] : memref<2x1x128xf32, #tpu.memory_space<vmem>> -> memref<1x1x128xf32, #tpu.memory_space<vmem>>
        %145 = tpu.memref_squeeze %144 : memref<1x1x128xf32, #tpu.memory_space<vmem>> -> memref<1x128xf32, #tpu.memory_space<vmem>>
        %146 = tpu.memref_slice %arg7[%136] : memref<2x!tpu.dma_semaphore, #tpu.memory_space<semaphore_mem>> -> memref<1x!tpu.dma_semaphore, #tpu.memory_space<semaphore_mem>>
        %147 = tpu.memref_squeeze %146 : memref<1x!tpu.dma_semaphore, #tpu.memory_space<semaphore_mem>> -> memref<!tpu.dma_semaphore, #tpu.memory_space<semaphore_mem>>
        tpu.enqueue_dma source(%143 : memref<1x128xf32, #tpu.memory_space<any>>) target(%145 : memref<1x128xf32, #tpu.memory_space<vmem>>) target_semaphore(%147 : memref<!tpu.dma_semaphore, #tpu.memory_space<semaphore_mem>>)
      } else {
      }
      %c5 = arith.constant 5 : index
      %c0_119 = arith.constant 0 : index
      %129 = vector.load %arg8[%c5, %c0_119] : memref<8x128xf32, #tpu.memory_space<vmem>>, vector<1x128xf32>
      %130 = arith.index_cast %119 : i32 to index
      %c0_120 = arith.constant 0 : index
      %c0_121 = arith.constant 0 : index
      %131 = vector.load %arg6[%130, %c0_120, %c0_121] : memref<2x1x128xf32, #tpu.memory_space<vmem>>, vector<1x1x128xf32>
      %132 = vector.shape_cast %131 : vector<1x1x128xf32> to vector<1x128xf32>
      %133 = arith.addf %129, %132 : vector<1x128xf32>
      %c5_122 = arith.constant 5 : index
      %c0_123 = arith.constant 0 : index
      %134 = vector.load %arg8[%c5_122, %c0_123] : memref<8x128xf32, #tpu.memory_space<vmem>>, vector<1x128xf32>
      tpu.vector_store %arg8[%c5_122, %c0_123], %133 {strides = array<i32>} : memref<8x128xf32, #tpu.memory_space<vmem>>, vector<1x128xf32>,
    }
    %c8_i32_70 = arith.constant 8 : i32
    %c48_i32 = arith.constant 48 : i32
    %75 = arith.addi %0, %c48_i32 : i32
    %c0_i32_71 = arith.constant 0 : i32
    %76 = arith.addi %75, %c0_i32_71 : i32
    %77 = arith.index_cast %76 : i32 to index
    %78 = memref.load %arg1[%77] : memref<64xi32, #tpu.memory_space<smem>>
    %c0_i32_72 = arith.constant 0 : i32
    %c127_i32_73 = arith.constant 127 : i32
    %79 = arith.maxsi %c0_i32_72, %78 : i32
    %80 = arith.minsi %c127_i32_73, %79 : i32
    %c0_i32_74 = arith.constant 0 : i32
    %c0_i32_75 = arith.constant 0 : i32
    %c0_i32_76 = arith.constant 0 : i32
    %81 = tpu.memref_slice %arg2[%80, %c0_i32_76] : memref<128x128xf32, #tpu.memory_space<any>> -> memref<1x128xf32, #tpu.memory_space<any>>
    %c0_i32_77 = arith.constant 0 : i32
    %c0_i32_78 = arith.constant 0 : i32
    %82 = tpu.memref_slice %arg6[%c0_i32_74, %c0_i32_77, %c0_i32_78] : memref<2x1x128xf32, #tpu.memory_space<vmem>> -> memref<1x1x128xf32, #tpu.memory_space<vmem>>
    %83 = tpu.memref_squeeze %82 : memref<1x1x128xf32, #tpu.memory_space<vmem>> -> memref<1x128xf32, #tpu.memory_space<vmem>>
    %84 = tpu.memref_slice %arg7[%c0_i32_75] : memref<2x!tpu.dma_semaphore, #tpu.memory_space<semaphore_mem>> -> memref<1x!tpu.dma_semaphore, #tpu.memory_space<semaphore_mem>>
    %85 = tpu.memref_squeeze %84 : memref<1x!tpu.dma_semaphore, #tpu.memory_space<semaphore_mem>> -> memref<!tpu.dma_semaphore, #tpu.memory_space<semaphore_mem>>
    tpu.enqueue_dma source(%81 : memref<1x128xf32, #tpu.memory_space<any>>) target(%83 : memref<1x128xf32, #tpu.memory_space<vmem>>) target_semaphore(%85 : memref<!tpu.dma_semaphore, #tpu.memory_space<semaphore_mem>>)
    %c0_i32_79 = arith.constant 0 : i32
    %c8_i32_80 = arith.constant 8 : i32
    %86 = arith.addi %c0_i32_79, %c8_i32_80 : i32
    %c1_i32_81 = arith.constant 1 : i32
    scf.for %arg9 = %c0_i32_79 to %86 step %c1_i32_81  : i32 {
      %c1_i32_105 = arith.constant 1 : i32
      %108 = arith.muli %arg9, %c1_i32_105 : i32
      %c0_i32_106 = arith.constant 0 : i32
      %109 = arith.addi %c0_i32_106, %108 : i32
      %c2_i32 = arith.constant 2 : i32
      %c0_i32_107 = arith.constant 0 : i32
      %110 = arith.cmpi eq, %c2_i32, %c0_i32_107 : i32
      %c1_i32_108 = arith.constant 1 : i32
      %111 = arith.select %110, %c1_i32_108, %c2_i32 : i32
      %112 = arith.remsi %109, %111 : i32
      %c0_i32_109 = arith.constant 0 : i32
      %113 = arith.cmpi ne, %112, %c0_i32_109 : i32
      %c0_i32_110 = arith.constant 0 : i32
      %114 = arith.cmpi slt, %112, %c0_i32_110 : i32
      %c0_i32_111 = arith.constant 0 : i32
      %115 = arith.cmpi slt, %111, %c0_i32_111 : i32
      %116 = arith.xori %114, %115 : i1
      %117 = arith.andi %116, %113 : i1
      %118 = arith.addi %112, %111 : i32
      %119 = arith.select %117, %118, %112 : i32
      %c0_i32_112 = arith.constant 0 : i32
      %c0_i32_113 = arith.constant 0 : i32
      %120 = tpu.memref_slice %arg2[%c0_i32_112, %c0_i32_113] : memref<128x128xf32, #tpu.memory_space<any>> -> memref<1x128xf32, #tpu.memory_space<any>>
      %c0_i32_114 = arith.constant 0 : i32
      %c0_i32_115 = arith.constant 0 : i32
      %121 = tpu.memref_slice %arg6[%119, %c0_i32_114, %c0_i32_115] : memref<2x1x128xf32, #tpu.memory_space<vmem>> -> memref<1x1x128xf32, #tpu.memory_space<vmem>>
      %122 = tpu.memref_squeeze %121 : memref<1x1x128xf32, #tpu.memory_space<vmem>> -> memref<1x128xf32, #tpu.memory_space<vmem>>
      %123 = tpu.memref_slice %arg7[%119] : memref<2x!tpu.dma_semaphore, #tpu.memory_space<semaphore_mem>> -> memref<1x!tpu.dma_semaphore, #tpu.memory_space<semaphore_mem>>
      %124 = tpu.memref_squeeze %123 : memref<1x!tpu.dma_semaphore, #tpu.memory_space<semaphore_mem>> -> memref<!tpu.dma_semaphore, #tpu.memory_space<semaphore_mem>>
      tpu.wait_dma2 semaphore(%124 : memref<!tpu.dma_semaphore, #tpu.memory_space<semaphore_mem>>) src(%120 : memref<1x128xf32, #tpu.memory_space<any>>) dst(%122 : memref<1x128xf32, #tpu.memory_space<vmem>>)
      %c1_i32_116 = arith.constant 1 : i32
      %125 = arith.addi %109, %c1_i32_116 : i32
      %c8_i32_117 = arith.constant 8 : i32
      %126 = arith.cmpi slt, %125, %c8_i32_117 : i32
      %127 = arith.extui %126 : i1 to i32
      %c0_i32_118 = arith.constant 0 : i32
      %128 = arith.cmpi ne, %127, %c0_i32_118 : i32
      scf.if %128 {
        %c1_i32_124 = arith.constant 1 : i32
        %135 = arith.addi %109, %c1_i32_124 : i32
        %c1_i32_125 = arith.constant 1 : i32
        %136 = arith.subi %c1_i32_125, %119 : i32
        %c48_i32_126 = arith.constant 48 : i32
        %137 = arith.addi %0, %c48_i32_126 : i32
        %138 = arith.addi %137, %135 : i32
        %139 = arith.index_cast %138 : i32 to index
        %140 = memref.load %arg1[%139] : memref<64xi32, #tpu.memory_space<smem>>
        %c0_i32_127 = arith.constant 0 : i32
        %c127_i32_128 = arith.constant 127 : i32
        %141 = arith.maxsi %c0_i32_127, %140 : i32
        %142 = arith.minsi %c127_i32_128, %141 : i32
        %c0_i32_129 = arith.constant 0 : i32
        %143 = tpu.memref_slice %arg2[%142, %c0_i32_129] : memref<128x128xf32, #tpu.memory_space<any>> -> memref<1x128xf32, #tpu.memory_space<any>>
        %c0_i32_130 = arith.constant 0 : i32
        %c0_i32_131 = arith.constant 0 : i32
        %144 = tpu.memref_slice %arg6[%136, %c0_i32_130, %c0_i32_131] : memref<2x1x128xf32, #tpu.memory_space<vmem>> -> memref<1x1x128xf32, #tpu.memory_space<vmem>>
        %145 = tpu.memref_squeeze %144 : memref<1x1x128xf32, #tpu.memory_space<vmem>> -> memref<1x128xf32, #tpu.memory_space<vmem>>
        %146 = tpu.memref_slice %arg7[%136] : memref<2x!tpu.dma_semaphore, #tpu.memory_space<semaphore_mem>> -> memref<1x!tpu.dma_semaphore, #tpu.memory_space<semaphore_mem>>
        %147 = tpu.memref_squeeze %146 : memref<1x!tpu.dma_semaphore, #tpu.memory_space<semaphore_mem>> -> memref<!tpu.dma_semaphore, #tpu.memory_space<semaphore_mem>>
        tpu.enqueue_dma source(%143 : memref<1x128xf32, #tpu.memory_space<any>>) target(%145 : memref<1x128xf32, #tpu.memory_space<vmem>>) target_semaphore(%147 : memref<!tpu.dma_semaphore, #tpu.memory_space<semaphore_mem>>)
      } else {
      }
      %c6 = arith.constant 6 : index
      %c0_119 = arith.constant 0 : index
      %129 = vector.load %arg8[%c6, %c0_119] : memref<8x128xf32, #tpu.memory_space<vmem>>, vector<1x128xf32>
      %130 = arith.index_cast %119 : i32 to index
      %c0_120 = arith.constant 0 : index
      %c0_121 = arith.constant 0 : index
      %131 = vector.load %arg6[%130, %c0_120, %c0_121] : memref<2x1x128xf32, #tpu.memory_space<vmem>>, vector<1x1x128xf32>
      %132 = vector.shape_cast %131 : vector<1x1x128xf32> to vector<1x128xf32>
      %133 = arith.addf %129, %132 : vector<1x128xf32>
      %c6_122 = arith.constant 6 : index
      %c0_123 = arith.constant 0 : index
      %134 = vector.load %arg8[%c6_122, %c0_123] : memref<8x128xf32, #tpu.memory_space<vmem>>, vector<1x128xf32>
      tpu.vector_store %arg8[%c6_122, %c0_123], %133 {strides = array<i32>} : memref<8x128xf32, #tpu.memory_space<vmem>>, vector<1x128xf32>,
    }
    %c8_i32_82 = arith.constant 8 : i32
    %c56_i32 = arith.constant 56 : i32
    %87 = arith.addi %0, %c56_i32 : i32
    %c0_i32_83 = arith.constant 0 : i32
    %88 = arith.addi %87, %c0_i32_83 : i32
    %89 = arith.index_cast %88 : i32 to index
    %90 = memref.load %arg1[%89] : memref<64xi32, #tpu.memory_space<smem>>
    %c0_i32_84 = arith.constant 0 : i32
    %c127_i32_85 = arith.constant 127 : i32
    %91 = arith.maxsi %c0_i32_84, %90 : i32
    %92 = arith.minsi %c127_i32_85, %91 : i32
    %c0_i32_86 = arith.constant 0 : i32
    %c0_i32_87 = arith.constant 0 : i32
    %c0_i32_88 = arith.constant 0 : i32
    %93 = tpu.memref_slice %arg2[%92, %c0_i32_88] : memref<128x128xf32, #tpu.memory_space<any>> -> memref<1x128xf32, #tpu.memory_space<any>>
    %c0_i32_89 = arith.constant 0 : i32
    %c0_i32_90 = arith.constant 0 : i32
    %94 = tpu.memref_slice %arg6[%c0_i32_86, %c0_i32_89, %c0_i32_90] : memref<2x1x128xf32, #tpu.memory_space<vmem>> -> memref<1x1x128xf32, #tpu.memory_space<vmem>>
    %95 = tpu.memref_squeeze %94 : memref<1x1x128xf32, #tpu.memory_space<vmem>> -> memref<1x128xf32, #tpu.memory_space<vmem>>
    %96 = tpu.memref_slice %arg7[%c0_i32_87] : memref<2x!tpu.dma_semaphore, #tpu.memory_space<semaphore_mem>> -> memref<1x!tpu.dma_semaphore, #tpu.memory_space<semaphore_mem>>
    %97 = tpu.memref_squeeze %96 : memref<1x!tpu.dma_semaphore, #tpu.memory_space<semaphore_mem>> -> memref<!tpu.dma_semaphore, #tpu.memory_space<semaphore_mem>>
    tpu.enqueue_dma source(%93 : memref<1x128xf32, #tpu.memory_space<any>>) target(%95 : memref<1x128xf32, #tpu.memory_space<vmem>>) target_semaphore(%97 : memref<!tpu.dma_semaphore, #tpu.memory_space<semaphore_mem>>)
    %c0_i32_91 = arith.constant 0 : i32
    %c8_i32_92 = arith.constant 8 : i32
    %98 = arith.addi %c0_i32_91, %c8_i32_92 : i32
    %c1_i32_93 = arith.constant 1 : i32
    scf.for %arg9 = %c0_i32_91 to %98 step %c1_i32_93  : i32 {
      %c1_i32_105 = arith.constant 1 : i32
      %108 = arith.muli %arg9, %c1_i32_105 : i32
      %c0_i32_106 = arith.constant 0 : i32
      %109 = arith.addi %c0_i32_106, %108 : i32
      %c2_i32 = arith.constant 2 : i32
      %c0_i32_107 = arith.constant 0 : i32
      %110 = arith.cmpi eq, %c2_i32, %c0_i32_107 : i32
      %c1_i32_108 = arith.constant 1 : i32
      %111 = arith.select %110, %c1_i32_108, %c2_i32 : i32
      %112 = arith.remsi %109, %111 : i32
      %c0_i32_109 = arith.constant 0 : i32
      %113 = arith.cmpi ne, %112, %c0_i32_109 : i32
      %c0_i32_110 = arith.constant 0 : i32
      %114 = arith.cmpi slt, %112, %c0_i32_110 : i32
      %c0_i32_111 = arith.constant 0 : i32
      %115 = arith.cmpi slt, %111, %c0_i32_111 : i32
      %116 = arith.xori %114, %115 : i1
      %117 = arith.andi %116, %113 : i1
      %118 = arith.addi %112, %111 : i32
      %119 = arith.select %117, %118, %112 : i32
      %c0_i32_112 = arith.constant 0 : i32
      %c0_i32_113 = arith.constant 0 : i32
      %120 = tpu.memref_slice %arg2[%c0_i32_112, %c0_i32_113] : memref<128x128xf32, #tpu.memory_space<any>> -> memref<1x128xf32, #tpu.memory_space<any>>
      %c0_i32_114 = arith.constant 0 : i32
      %c0_i32_115 = arith.constant 0 : i32
      %121 = tpu.memref_slice %arg6[%119, %c0_i32_114, %c0_i32_115] : memref<2x1x128xf32, #tpu.memory_space<vmem>> -> memref<1x1x128xf32, #tpu.memory_space<vmem>>
      %122 = tpu.memref_squeeze %121 : memref<1x1x128xf32, #tpu.memory_space<vmem>> -> memref<1x128xf32, #tpu.memory_space<vmem>>
      %123 = tpu.memref_slice %arg7[%119] : memref<2x!tpu.dma_semaphore, #tpu.memory_space<semaphore_mem>> -> memref<1x!tpu.dma_semaphore, #tpu.memory_space<semaphore_mem>>
      %124 = tpu.memref_squeeze %123 : memref<1x!tpu.dma_semaphore, #tpu.memory_space<semaphore_mem>> -> memref<!tpu.dma_semaphore, #tpu.memory_space<semaphore_mem>>
      tpu.wait_dma2 semaphore(%124 : memref<!tpu.dma_semaphore, #tpu.memory_space<semaphore_mem>>) src(%120 : memref<1x128xf32, #tpu.memory_space<any>>) dst(%122 : memref<1x128xf32, #tpu.memory_space<vmem>>)
      %c1_i32_116 = arith.constant 1 : i32
      %125 = arith.addi %109, %c1_i32_116 : i32
      %c8_i32_117 = arith.constant 8 : i32
      %126 = arith.cmpi slt, %125, %c8_i32_117 : i32
      %127 = arith.extui %126 : i1 to i32
      %c0_i32_118 = arith.constant 0 : i32
      %128 = arith.cmpi ne, %127, %c0_i32_118 : i32
      scf.if %128 {
        %c1_i32_124 = arith.constant 1 : i32
        %135 = arith.addi %109, %c1_i32_124 : i32
        %c1_i32_125 = arith.constant 1 : i32
        %136 = arith.subi %c1_i32_125, %119 : i32
        %c56_i32_126 = arith.constant 56 : i32
        %137 = arith.addi %0, %c56_i32_126 : i32
        %138 = arith.addi %137, %135 : i32
        %139 = arith.index_cast %138 : i32 to index
        %140 = memref.load %arg1[%139] : memref<64xi32, #tpu.memory_space<smem>>
        %c0_i32_127 = arith.constant 0 : i32
        %c127_i32_128 = arith.constant 127 : i32
        %141 = arith.maxsi %c0_i32_127, %140 : i32
        %142 = arith.minsi %c127_i32_128, %141 : i32
        %c0_i32_129 = arith.constant 0 : i32
        %143 = tpu.memref_slice %arg2[%142, %c0_i32_129] : memref<128x128xf32, #tpu.memory_space<any>> -> memref<1x128xf32, #tpu.memory_space<any>>
        %c0_i32_130 = arith.constant 0 : i32
        %c0_i32_131 = arith.constant 0 : i32
        %144 = tpu.memref_slice %arg6[%136, %c0_i32_130, %c0_i32_131] : memref<2x1x128xf32, #tpu.memory_space<vmem>> -> memref<1x1x128xf32, #tpu.memory_space<vmem>>
        %145 = tpu.memref_squeeze %144 : memref<1x1x128xf32, #tpu.memory_space<vmem>> -> memref<1x128xf32, #tpu.memory_space<vmem>>
        %146 = tpu.memref_slice %arg7[%136] : memref<2x!tpu.dma_semaphore, #tpu.memory_space<semaphore_mem>> -> memref<1x!tpu.dma_semaphore, #tpu.memory_space<semaphore_mem>>
        %147 = tpu.memref_squeeze %146 : memref<1x!tpu.dma_semaphore, #tpu.memory_space<semaphore_mem>> -> memref<!tpu.dma_semaphore, #tpu.memory_space<semaphore_mem>>
        tpu.enqueue_dma source(%143 : memref<1x128xf32, #tpu.memory_space<any>>) target(%145 : memref<1x128xf32, #tpu.memory_space<vmem>>) target_semaphore(%147 : memref<!tpu.dma_semaphore, #tpu.memory_space<semaphore_mem>>)
      } else {
      }
      %c7 = arith.constant 7 : index
      %c0_119 = arith.constant 0 : index
      %129 = vector.load %arg8[%c7, %c0_119] : memref<8x128xf32, #tpu.memory_space<vmem>>, vector<1x128xf32>
      %130 = arith.index_cast %119 : i32 to index
      %c0_120 = arith.constant 0 : index
      %c0_121 = arith.constant 0 : index
      %131 = vector.load %arg6[%130, %c0_120, %c0_121] : memref<2x1x128xf32, #tpu.memory_space<vmem>>, vector<1x1x128xf32>
      %132 = vector.shape_cast %131 : vector<1x1x128xf32> to vector<1x128xf32>
      %133 = arith.addf %129, %132 : vector<1x128xf32>
      %c7_122 = arith.constant 7 : index
      %c0_123 = arith.constant 0 : index
      %134 = vector.load %arg8[%c7_122, %c0_123] : memref<8x128xf32, #tpu.memory_space<vmem>>, vector<1x128xf32>
      tpu.vector_store %arg8[%c7_122, %c0_123], %133 {strides = array<i32>} : memref<8x128xf32, #tpu.memory_space<vmem>>, vector<1x128xf32>,
    }
    %c8_i32_94 = arith.constant 8 : i32
    %c0_95 = arith.constant 0 : index
    %c0_96 = arith.constant 0 : index
    %99 = vector.load %arg8[%c0_95, %c0_96] : memref<8x128xf32, #tpu.memory_space<vmem>>, vector<8x128xf32>
    %cst_97 = arith.constant 1.250000e-01 : f32
    %100 = vector.broadcast %cst_97 : f32 to vector<8x128xf32>
    %101 = arith.mulf %99, %100 : vector<8x128xf32>
    %c0_98 = arith.constant 0 : index
    %c0_99 = arith.constant 0 : index
    %102 = vector.load %arg3[%c0_98, %c0_99] : memref<128x128xf32, #tpu.memory_space<vmem>>, vector<128x128xf32>
    %cst_100 = arith.constant dense<0.000000e+00> : vector<8x128xf32>
    %103 = tpu.matmul %101, %102, %cst_100 {dimension_numbers = #tpu.dot_dimension_numbers<[1], [0], [0], [1], [0, 0, 1, 1], [], []>} : vector<8x128xf32>, vector<128x128xf32>, vector<8x128xf32> -> vector<8x128xf32>
    %c0_101 = arith.constant 0 : index
    %c0_102 = arith.constant 0 : index
    %104 = vector.load %arg4[%c0_101, %c0_102] : memref<1x128xf32, #tpu.memory_space<vmem>>, vector<1x128xf32>
    %105 = vector.broadcast %104 : vector<1x128xf32> to vector<8x128xf32>
    %106 = arith.addf %103, %105 : vector<8x128xf32>
    %c0_103 = arith.constant 0 : index
    %c0_104 = arith.constant 0 : index
    %107 = vector.load %arg5[%c0_103, %c0_104] : memref<8x128xf32, #tpu.memory_space<vmem>>, vector<8x128xf32>
    tpu.vector_store %arg5[%c0_103, %c0_104], %106 {strides = array<i32>} : memref<8x128xf32, #tpu.memory_space<vmem>>, vector<8x128xf32>,
    return
  }
  func.func @transform_1(%arg0: i32, %arg1: memref<64xi32, #tpu.memory_space<smem>>) -> (i32, i32) {
    %c0_i32 = arith.constant 0 : i32
    %c0_i32_0 = arith.constant 0 : i32
    %c0_i32_1 = arith.constant 0 : i32
    return %c0_i32, %c0_i32_0 : i32, i32
  }
  func.func @transform_2(%arg0: i32, %arg1: memref<64xi32, #tpu.memory_space<smem>>) -> (i32, i32) {
    %c0_i32 = arith.constant 0 : i32
    %c0_i32_0 = arith.constant 0 : i32
    %c0_i32_1 = arith.constant 0 : i32
    return %c0_i32, %c0_i32_0 : i32, i32
  }
  func.func @transform_3(%arg0: i32, %arg1: memref<64xi32, #tpu.memory_space<smem>>) -> (i32, i32) {
    %c0_i32 = arith.constant 0 : i32
    %c0_i32_0 = arith.constant 0 : i32
    return %arg0, %c0_i32 : i32, i32
  }
}

</mosaic_0001>

<llo_original>
// kernel: tpu_custom_call.1
$region0: #{tpu_custom_call.1}
  #allocation0 [shape = 'u32[]', space=smem, size = 0x4, offset = 0x4, fixed_abs, tag = 'smem constant byte address 0x4 - core index']
  #allocation1 [shape = 'u32[144,128]{1,0:T(1,128)}', space=vmem, size = 0x12000, scoped, tag = 'internal scratch']
  #allocation2 [shape = 'f32[2,1,128]{2,1,0:T(1,128)}', space=vmem, size = 0x400, scoped, tag = 'scratch operand']
  #allocation3 [shape = 's32[2]{0}', space=sflag, size = 0x8, scoped, tag = 'scratch operand']
  #allocation4 [shape = 'f32[8,128]{1,0:T(8,128)}', space=vmem, size = 0x1000, scoped, tag = 'scratch operand']
  #allocation5 [shape = 's32[1]{0}', space=sflag, size = 0x4, scoped, tag = 'scoped memory for tpu_custom_call.1']
  #allocation6 [shape = 'u8[512]{0}', space=smem, size = 0x200, scoped, tag = 'prefetched SMEM operand 0']
  #allocation11 [shape = 's32[]', space=sflag, size = 0x4, offset = 0, fixed_abs, tag = 'sflag constant byte address 0x0 - dummy sync flag']
  #allocation12 [shape = 's32[]', space=sflag, size = 0x4, offset = 0, fixed_abs, tag = 'sflag constant byte address 0x0 - dummy sync flag']
  #allocation13 [shape = 'u32[]', space=smem, size = 0x4, offset = 0x44, fixed_abs, tag = 'smem constant byte address 0x44 - assertion arg 0']
  #allocation14 [shape = 'u32[]', space=smem, size = 0x4, offset = 0x48, fixed_abs, tag = 'smem constant byte address 0x48 - assertion arg 1']
  #allocation15 [shape = 's32[]', space=sflag, size = 0x4, offset = 0, fixed_abs, tag = 'sflag constant byte address 0x0 - dummy sync flag']
  #allocation16 [shape = 's32[]', space=sflag, size = 0x4, offset = 0, fixed_abs, tag = 'sflag constant byte address 0x0 - dummy sync flag']
  #allocation17 [shape = 's32[]', space=sflag, size = 0x4, offset = 0, fixed_abs, tag = 'sflag constant byte address 0x0 - dummy sync flag']
  #allocation18 [shape = 's32[]', space=sflag, size = 0x4, offset = 0, fixed_abs, tag = 'sflag constant byte address 0x0 - dummy sync flag']
  #allocation19 [shape = 's32[]', space=sflag, size = 0x4, offset = 0, fixed_abs, tag = 'sflag constant byte address 0x0 - dummy sync flag']
  #allocation20 [shape = 's32[]', space=sflag, size = 0x4, offset = 0, fixed_abs, tag = 'sflag constant byte address 0x0 - dummy sync flag']
  #allocation21 [shape = 's32[]', space=sflag, size = 0x4, offset = 0, fixed_abs, tag = 'sflag constant byte address 0x0 - dummy sync flag']
  #allocation22 [shape = 's32[]', space=sflag, size = 0x4, offset = 0, fixed_abs, tag = 'sflag constant byte address 0x0 - dummy sync flag']
  #allocation23 [shape = 's32[]', space=sflag, size = 0x4, offset = 0, fixed_abs, tag = 'sflag constant byte address 0x0 - dummy sync flag']
  #allocation24 [shape = 's32[]', space=sflag, size = 0x4, offset = 0, fixed_abs, tag = 'sflag constant byte address 0x0 - dummy sync flag']
  #allocation25 [shape = 's32[]', space=sflag, size = 0x4, offset = 0, fixed_abs, tag = 'sflag constant byte address 0x0 - dummy sync flag']
  #allocation26 [shape = 's32[]', space=sflag, size = 0x4, offset = 0, fixed_abs, tag = 'sflag constant byte address 0x0 - dummy sync flag']
  #allocation27 [shape = 's32[]', space=sflag, size = 0x4, offset = 0, fixed_abs, tag = 'sflag constant byte address 0x0 - dummy sync flag']
  #allocation28 [shape = 's32[]', space=sflag, size = 0x4, offset = 0, fixed_abs, tag = 'sflag constant byte address 0x0 - dummy sync flag']
  #allocation29 [shape = 's32[]', space=sflag, size = 0x4, offset = 0, fixed_abs, tag = 'sflag constant byte address 0x0 - dummy sync flag']
  #allocation30 [shape = 's32[]', space=sflag, size = 0x4, offset = 0, fixed_abs, tag = 'sflag constant byte address 0x0 - dummy sync flag']
  #allocation31 [shape = 's32[]', space=sflag, size = 0x4, offset = 0, fixed_abs, tag = 'sflag constant byte address 0x0 - dummy sync flag']
  #allocation32 [shape = 's32[]', space=sflag, size = 0x4, offset = 0, fixed_abs, tag = 'sflag constant byte address 0x0 - dummy sync flag']
  #allocation33 [shape = 's32[]', space=sflag, size = 0x4, offset = 0, fixed_abs, tag = 'sflag constant byte address 0x0 - dummy sync flag']
  #allocation34 [shape = 's32[]', space=sflag, size = 0x4, offset = 0, fixed_abs, tag = 'sflag constant byte address 0x0 - dummy sync flag']
  #allocation35 [shape = 's32[]', space=sflag, size = 0x4, offset = 0, fixed_abs, tag = 'sflag constant byte address 0x0 - dummy sync flag']
  #allocation36 [shape = 's32[]', space=sflag, size = 0x4, offset = 0, fixed_abs, tag = 'sflag constant byte address 0x0 - dummy sync flag']
  #allocation37 [shape = 's32[]', space=sflag, size = 0x4, offset = 0, fixed_abs, tag = 'sflag constant byte address 0x0 - dummy sync flag']
  #allocation38 [shape = 's32[]', space=sflag, size = 0x4, offset = 0, fixed_abs, tag = 'sflag constant byte address 0x0 - dummy sync flag']
  #allocation39 [shape = 's32[]', space=sflag, size = 0x4, offset = 0, fixed_abs, tag = 'sflag constant byte address 0x0 - dummy sync flag']
  #allocation40 [shape = 's32[]', space=sflag, size = 0x4, offset = 0, fixed_abs, tag = 'sflag constant byte address 0x0 - dummy sync flag']
  #allocation41 [shape = 's32[]', space=sflag, size = 0x4, offset = 0, fixed_abs, tag = 'sflag constant byte address 0x0 - dummy sync flag']
  #allocation42 [shape = 's32[]', space=sflag, size = 0x4, offset = 0, fixed_abs, tag = 'sflag constant byte address 0x0 - dummy sync flag']
  #allocation43 [shape = 's32[]', space=sflag, size = 0x4, offset = 0, fixed_abs, tag = 'sflag constant byte address 0x0 - dummy sync flag']
  #allocation44 [shape = 's32[]', space=sflag, size = 0x4, offset = 0, fixed_abs, tag = 'sflag constant byte address 0x0 - dummy sync flag']
  %s0 = inlined_call_operand.hbm [shape: s32[64], index: 0, kind: input, shape index: {}]
  %s1 = inlined_call_operand.hbm [shape: f32[128,128], index: 1, kind: input, shape index: {}]
  %s2 = inlined_call_operand.hbm [shape: f32[128,128], index: 2, kind: input, shape index: {}]
  %s3 = inlined_call_operand.vmem [shape: f32[1,128], index: 3, kind: input, shape index: {}]
  %s4 = inlined_call_operand.hbm [shape: f32[8,128], index: 4, kind: output, shape index: {}]
  %s5 = sld [smem:[#allocation0]]
  $region174: #{tpu_custom_call.1} parent=0
    _
  %s7 = ssub.s32 1, %s5
  %s8 = scalar_select 0, %s7, %s5
  %10 = dma.hbm_to_smem %s0, 16, [#allocation6], [#allocation5]
  %11 = dma.done [#allocation5], 16
  %12 = sfence
  $region1: #{tpu_custom_call.1} parent=0
    #allocation7 [shape = 'u8[65536]{0}', space=vmem, size = 0x10000, scoped, tag = 'input window, operand 2, single buffered']
    #allocation8 [shape = 's32[1]{0}', space=sflag, size = 0x4, scoped, tag = 'scoped memory for tpu_custom_call.1']
    #allocation9 [shape = 's32[1]{0}', space=sflag, size = 0x4, scoped, tag = 'scoped memory for tpu_custom_call.1']
    #allocation10 [shape = 'u8[4096]{0}', space=vmem, size = 0x1000, scoped, tag = 'output window, operand 0, single buffered']
    %13 = vsyncpa [#allocation8], 0
    %14 = vsyncpa [#allocation9], 0
    // Predicated region
    $region2: #{tpu_custom_call.1} parent=1 // pred_check
      _
    $region3: #{tpu_custom_call.1} parent=1 // pred_check_branch
      %16 = sbr.rel (0) target = $region5
    $region4: #{tpu_custom_call.1} parent=1 // pred_region
      %s18 = ssub.s32 2048, 2048
      %19 = vsyncadd [#allocation8], %s18
      %s20 = sshll.u32 [#allocation7], 4
      %s21 = int_to_ptr.vmem [resolvable:$true] %s20
      %26 = dma.hbm_to_vmem [thread:$0]  %s2, 2048, %s21, [#allocation8], 128, 128, 8
    $region5: #{tpu_custom_call.1} parent=1 // pred_fallthru
      _
    // Predicated region
    $region6: #{tpu_custom_call.1} parent=1 // pred_check
      _
    $region7: #{tpu_custom_call.1} parent=1 // pred_check_branch
      %28 = sbr.rel (0) target = $region9
    $region8: #{tpu_custom_call.1} parent=1 // pred_region
      _
    $region9: #{tpu_custom_call.1} parent=1 // pred_fallthru
      _
    // Predicated region
    $region10: #{tpu_custom_call.1} parent=1 // pred_check
      _
    $region11: #{tpu_custom_call.1} parent=1 // pred_check_branch
      %30 = sbr.rel (0) target = $region13
    $region12: #{tpu_custom_call.1} parent=1 // pred_region
      %31 = dma.done [#allocation8], 2048
    $region13: #{tpu_custom_call.1} parent=1 // pred_fallthru
      _
    %s32 = smul.u32 0, 64
    %33 = vst [vmem:[#allocation4] sm:$0xff] 0.0
    %s34 = sld [smem:[#allocation6 + %s32]]
    %p35 = scmp.gt.s32.totalorder %s34, 0
    %s36 = scalar_select %p35, %s34, 0
    %p37 = scmp.lt.s32.totalorder %s36, 127
    %s38 = scalar_select %p37, %s36, 127
    %s39 = smul.addr %s38, 16
    %s40 = scalar_lea.hbm %s1, %s39
    // Predicated region
    $region14: #{tpu_custom_call.1} parent=1 // pred_check
      _
    $region15: #{tpu_custom_call.1} parent=1 // pred_check_branch
      %42 = sbr.rel target = $region17
    $region16: #{tpu_custom_call.1} parent=1 // pred_region
      %43 = sst [smem:[#allocation13]] [#allocation12]
      %44 = sst [smem:[#allocation14]] [#allocation11]
    $region17: #{tpu_custom_call.1} parent=1 // pred_fallthru
      _
    %46 = shalt.err (0)
    %s48 = sshll.u32 [#allocation2], 4
    %s49 = int_to_ptr.vmem [resolvable:$true] %s48
    %51 = dma.hbm_to_vmem [thread:$0]  %s40, 16, %s49, [#allocation3]
    loop: start=0, step=1, limit=8
    $region18: #{tpu_custom_call.1} parent=1 // loop_pre_header
      _
    $region19: #{tpu_custom_call.1} parent=1 // loop_header
      %s53 = sphi 0, %s57
      %p54 = scmp.ge.s32.totalorder %s53, 8
    $region20: #{tpu_custom_call.1} parent=1 // loop_header_branch
      %56 = sbr.rel (%p54) target = $region24
    $region21: #{tpu_custom_call.1} parent=1 // loop_body
      %p58 = scmp.lt.s32.totalorder %s53, 0
      %s59 = ssub.s32 0, %s53
      %s60 = scalar_select %p58, %s59, %s53
      %s61 = sand.u32 %s60, 1
      %s62 = ssub.s32 0, %s61
      %s63 = scalar_select %p58, %s62, %s61
      %p64 = scmp.ne.s32.totalorder %s63, 0
      %p65 = scmp.lt.s32.totalorder %s63, 0
      %p66 = pnand %p65, %p64
      %p67 = pneg %p66
      %s68 = sadd.s32 %s63, 2
      %s69 = scalar_select %p67, %s68, %s63
      %s70 = scalar_lea.vmem [#allocation2], %s69
      %s71 = scalar_lea.sflag [#allocation3], %s69
      %s72 = smul.u32 1, 1
      %s73 = sshll.u32 %s72, 4
      %74 = dma.done %s71, %s73
      %s75 = sadd.s32 %s53, 1
      %p76 = scmp.lt.s32.totalorder %s75, 8
      // Predicated region
      $region25: #{tpu_custom_call.1} parent=21 // pred_check
        %p77 = pneg %p76
      $region26: #{tpu_custom_call.1} parent=21 // pred_check_branch
        %79 = sbr.rel (%p77) target = $region28
      $region27: #{tpu_custom_call.1} parent=21 // pred_region
        %s80 = ssub.s32 1, %s69
        %s81 = sadd.s32 %s32, %s75
        %s82 = sld [smem:[#allocation6 + %s81]]
        %p83 = scmp.gt.s32.totalorder %s82, 0
        %s84 = scalar_select %p83, %s82, 0
        %p85 = scmp.lt.s32.totalorder %s84, 127
        %s86 = scalar_select %p85, %s84, 127
        %s87 = smul.addr %s86, 16
        %s88 = scalar_lea.hbm %s1, %s87
        %s89 = scalar_lea.vmem [#allocation2], %s80
        %s90 = scalar_lea.sflag [#allocation3], %s80
        // Predicated region
        $region29: #{tpu_custom_call.1} parent=27 // pred_check
          _
        $region30: #{tpu_custom_call.1} parent=27 // pred_check_branch
          %92 = sbr.rel target = $region32
        $region31: #{tpu_custom_call.1} parent=27 // pred_region
          %93 = sst [smem:[#allocation13]] [#allocation16]
          %94 = sst [smem:[#allocation14]] [#allocation15]
        $region32: #{tpu_custom_call.1} parent=27 // pred_fallthru
          _
        %96 = shalt.err (0)
        %s98 = sshll.u32 %s89, 4
        %s99 = int_to_ptr.vmem [resolvable:$true] %s98
        %101 = dma.hbm_to_vmem [thread:$0]  %s88, 16, %s99, %s90
      $region28: #{tpu_custom_call.1} parent=21 // pred_fallthru
        _
      %v102 = vld [vmem:[#allocation4] sm:$0x1]
      %v103 = vld [vmem:[%s70] sm:$0x1]
      %v104 = vadd.f32 %v102, %v103
      %105 = vst [vmem:[#allocation4] sm:$0x1] %v104
    $region22: #{tpu_custom_call.1} parent=1 // loop_footer
      %s57 = sadd.s32 1, %s53
    $region23: #{tpu_custom_call.1} parent=1 // loop_footer_branch
      %52 = sbr.rel target = $region19
    $region24: #{tpu_custom_call.1} parent=1 // loop_exit
      _
    %s106 = sadd.s32 %s32, 8
    %s107 = sld [smem:[#allocation6 + %s106]]
    %p108 = scmp.gt.s32.totalorder %s107, 0
    %s109 = scalar_select %p108, %s107, 0
    %p110 = scmp.lt.s32.totalorder %s109, 127
    %s111 = scalar_select %p110, %s109, 127
    %s112 = smul.addr %s111, 16
    %s113 = scalar_lea.hbm %s1, %s112
    // Predicated region
    $region33: #{tpu_custom_call.1} parent=1 // pred_check
      _
    $region34: #{tpu_custom_call.1} parent=1 // pred_check_branch
      %115 = sbr.rel target = $region36
    $region35: #{tpu_custom_call.1} parent=1 // pred_region
      %116 = sst [smem:[#allocation13]] [#allocation18]
      %117 = sst [smem:[#allocation14]] [#allocation17]
    $region36: #{tpu_custom_call.1} parent=1 // pred_fallthru
      _
    %119 = shalt.err (0)
    %s121 = sshll.u32 [#allocation2], 4
    %s122 = int_to_ptr.vmem [resolvable:$true] %s121
    %124 = dma.hbm_to_vmem [thread:$0]  %s113, 16, %s122, [#allocation3]
    loop: start=0, step=1, limit=8
    $region37: #{tpu_custom_call.1} parent=1 // loop_pre_header
      _
    $region38: #{tpu_custom_call.1} parent=1 // loop_header
      %s126 = sphi 0, %s130
      %p127 = scmp.ge.s32.totalorder %s126, 8
    $region39: #{tpu_custom_call.1} parent=1 // loop_header_branch
      %129 = sbr.rel (%p127) target = $region43
    $region40: #{tpu_custom_call.1} parent=1 // loop_body
      %p131 = scmp.lt.s32.totalorder %s126, 0
      %s132 = ssub.s32 0, %s126
      %s133 = scalar_select %p131, %s132, %s126
      %s134 = sand.u32 %s133, 1
      %s135 = ssub.s32 0, %s134
      %s136 = scalar_select %p131, %s135, %s134
      %p137 = scmp.ne.s32.totalorder %s136, 0
      %p138 = scmp.lt.s32.totalorder %s136, 0
      %p139 = pnand %p138, %p137
      %p140 = pneg %p139
      %s141 = sadd.s32 %s136, 2
      %s142 = scalar_select %p140, %s141, %s136
      %s143 = scalar_lea.vmem [#allocation2], %s142
      %s144 = scalar_lea.sflag [#allocation3], %s142
      %s145 = smul.u32 1, 1
      %s146 = sshll.u32 %s145, 4
      %147 = dma.done %s144, %s146
      %s148 = sadd.s32 %s126, 1
      %p149 = scmp.lt.s32.totalorder %s148, 8
      // Predicated region
      $region44: #{tpu_custom_call.1} parent=40 // pred_check
        %p150 = pneg %p149
      $region45: #{tpu_custom_call.1} parent=40 // pred_check_branch
        %152 = sbr.rel (%p150) target = $region47
      $region46: #{tpu_custom_call.1} parent=40 // pred_region
        %s153 = ssub.s32 1, %s142
        %s154 = sadd.s32 %s106, %s148
        %s155 = sld [smem:[#allocation6 + %s154]]
        %p156 = scmp.gt.s32.totalorder %s155, 0
        %s157 = scalar_select %p156, %s155, 0
        %p158 = scmp.lt.s32.totalorder %s157, 127
        %s159 = scalar_select %p158, %s157, 127
        %s160 = smul.addr %s159, 16
        %s161 = scalar_lea.hbm %s1, %s160
        %s162 = scalar_lea.vmem [#allocation2], %s153
        %s163 = scalar_lea.sflag [#allocation3], %s153
        // Predicated region
        $region48: #{tpu_custom_call.1} parent=46 // pred_check
          _
        $region49: #{tpu_custom_call.1} parent=46 // pred_check_branch
          %165 = sbr.rel target = $region51
        $region50: #{tpu_custom_call.1} parent=46 // pred_region
          %166 = sst [smem:[#allocation13]] [#allocation20]
          %167 = sst [smem:[#allocation14]] [#allocation19]
        $region51: #{tpu_custom_call.1} parent=46 // pred_fallthru
          _
        %169 = shalt.err (0)
        %s171 = sshll.u32 %s162, 4
        %s172 = int_to_ptr.vmem [resolvable:$true] %s171
        %174 = dma.hbm_to_vmem [thread:$0]  %s161, 16, %s172, %s163
      $region47: #{tpu_custom_call.1} parent=40 // pred_fallthru
        _
      %v175 = vld [vmem:[#allocation4 + $0x1] sm:$0x1]
      %v176 = vld [vmem:[%s143] sm:$0x1]
      %v177 = vadd.f32 %v175, %v176
      %178 = vst [vmem:[#allocation4 + $0x1] sm:$0x1] %v177
    $region41: #{tpu_custom_call.1} parent=1 // loop_footer
      %s130 = sadd.s32 1, %s126
    $region42: #{tpu_custom_call.1} parent=1 // loop_footer_branch
      %125 = sbr.rel target = $region38
    $region43: #{tpu_custom_call.1} parent=1 // loop_exit
      _
    %s179 = sadd.s32 %s32, 16
    %s180 = sld [smem:[#allocation6 + %s179]]
    %p181 = scmp.gt.s32.totalorder %s180, 0
    %s182 = scalar_select %p181, %s180, 0
    %p183 = scmp.lt.s32.totalorder %s182, 127
    %s184 = scalar_select %p183, %s182, 127
    %s185 = smul.addr %s184, 16
    %s186 = scalar_lea.hbm %s1, %s185
    // Predicated region
    $region52: #{tpu_custom_call.1} parent=1 // pred_check
      _
    $region53: #{tpu_custom_call.1} parent=1 // pred_check_branch
      %188 = sbr.rel target = $region55
    $region54: #{tpu_custom_call.1} parent=1 // pred_region
      %189 = sst [smem:[#allocation13]] [#allocation22]
      %190 = sst [smem:[#allocation14]] [#allocation21]
    $region55: #{tpu_custom_call.1} parent=1 // pred_fallthru
      _
    %192 = shalt.err (0)
    %s194 = sshll.u32 [#allocation2], 4
    %s195 = int_to_ptr.vmem [resolvable:$true] %s194
    %197 = dma.hbm_to_vmem [thread:$0]  %s186, 16, %s195, [#allocation3]
    loop: start=0, step=1, limit=8
    $region56: #{tpu_custom_call.1} parent=1 // loop_pre_header
      _
    $region57: #{tpu_custom_call.1} parent=1 // loop_header
      %s199 = sphi 0, %s203
      %p200 = scmp.ge.s32.totalorder %s199, 8
    $region58: #{tpu_custom_call.1} parent=1 // loop_header_branch
      %202 = sbr.rel (%p200) target = $region62
    $region59: #{tpu_custom_call.1} parent=1 // loop_body
      %p204 = scmp.lt.s32.totalorder %s199, 0
      %s205 = ssub.s32 0, %s199
      %s206 = scalar_select %p204, %s205, %s199
      %s207 = sand.u32 %s206, 1
      %s208 = ssub.s32 0, %s207
      %s209 = scalar_select %p204, %s208, %s207
      %p210 = scmp.ne.s32.totalorder %s209, 0
      %p211 = scmp.lt.s32.totalorder %s209, 0
      %p212 = pnand %p211, %p210
      %p213 = pneg %p212
      %s214 = sadd.s32 %s209, 2
      %s215 = scalar_select %p213, %s214, %s209
      %s216 = scalar_lea.vmem [#allocation2], %s215
      %s217 = scalar_lea.sflag [#allocation3], %s215
      %s218 = smul.u32 1, 1
      %s219 = sshll.u32 %s218, 4
      %220 = dma.done %s217, %s219
      %s221 = sadd.s32 %s199, 1
      %p222 = scmp.lt.s32.totalorder %s221, 8
      // Predicated region
      $region63: #{tpu_custom_call.1} parent=59 // pred_check
        %p223 = pneg %p222
      $region64: #{tpu_custom_call.1} parent=59 // pred_check_branch
        %225 = sbr.rel (%p223) target = $region66
      $region65: #{tpu_custom_call.1} parent=59 // pred_region
        %s226 = ssub.s32 1, %s215
        %s227 = sadd.s32 %s179, %s221
        %s228 = sld [smem:[#allocation6 + %s227]]
        %p229 = scmp.gt.s32.totalorder %s228, 0
        %s230 = scalar_select %p229, %s228, 0
        %p231 = scmp.lt.s32.totalorder %s230, 127
        %s232 = scalar_select %p231, %s230, 127
        %s233 = smul.addr %s232, 16
        %s234 = scalar_lea.hbm %s1, %s233
        %s235 = scalar_lea.vmem [#allocation2], %s226
        %s236 = scalar_lea.sflag [#allocation3], %s226
        // Predicated region
        $region67: #{tpu_custom_call.1} parent=65 // pred_check
          _
        $region68: #{tpu_custom_call.1} parent=65 // pred_check_branch
          %238 = sbr.rel target = $region70
        $region69: #{tpu_custom_call.1} parent=65 // pred_region
          %239 = sst [smem:[#allocation13]] [#allocation24]
          %240 = sst [smem:[#allocation14]] [#allocation23]
        $region70: #{tpu_custom_call.1} parent=65 // pred_fallthru
          _
        %242 = shalt.err (0)
        %s244 = sshll.u32 %s235, 4
        %s245 = int_to_ptr.vmem [resolvable:$true] %s244
        %247 = dma.hbm_to_vmem [thread:$0]  %s234, 16, %s245, %s236
      $region66: #{tpu_custom_call.1} parent=59 // pred_fallthru
        _
      %v248 = vld [vmem:[#allocation4 + $0x2] sm:$0x1]
      %v249 = vld [vmem:[%s216] sm:$0x1]
      %v250 = vadd.f32 %v248, %v249
      %251 = vst [vmem:[#allocation4 + $0x2] sm:$0x1] %v250
    $region60: #{tpu_custom_call.1} parent=1 // loop_footer
      %s203 = sadd.s32 1, %s199
    $region61: #{tpu_custom_call.1} parent=1 // loop_footer_branch
      %198 = sbr.rel target = $region57
    $region62: #{tpu_custom_call.1} parent=1 // loop_exit
      _
    %s252 = sadd.s32 %s32, 24
    %s253 = sld [smem:[#allocation6 + %s252]]
    %p254 = scmp.gt.s32.totalorder %s253, 0
    %s255 = scalar_select %p254, %s253, 0
    %p256 = scmp.lt.s32.totalorder %s255, 127
    %s257 = scalar_select %p256, %s255, 127
    %s258 = smul.addr %s257, 16
    %s259 = scalar_lea.hbm %s1, %s258
    // Predicated region
    $region71: #{tpu_custom_call.1} parent=1 // pred_check
      _
    $region72: #{tpu_custom_call.1} parent=1 // pred_check_branch
      %261 = sbr.rel target = $region74
    $region73: #{tpu_custom_call.1} parent=1 // pred_region
      %262 = sst [smem:[#allocation13]] [#allocation26]
      %263 = sst [smem:[#allocation14]] [#allocation25]
    $region74: #{tpu_custom_call.1} parent=1 // pred_fallthru
      _
    %265 = shalt.err (0)
    %s267 = sshll.u32 [#allocation2], 4
    %s268 = int_to_ptr.vmem [resolvable:$true] %s267
    %270 = dma.hbm_to_vmem [thread:$0]  %s259, 16, %s268, [#allocation3]
    loop: start=0, step=1, limit=8
    $region75: #{tpu_custom_call.1} parent=1 // loop_pre_header
      _
    $region76: #{tpu_custom_call.1} parent=1 // loop_header
      %s272 = sphi 0, %s276
      %p273 = scmp.ge.s32.totalorder %s272, 8
    $region77: #{tpu_custom_call.1} parent=1 // loop_header_branch
      %275 = sbr.rel (%p273) target = $region81
    $region78: #{tpu_custom_call.1} parent=1 // loop_body
      %p277 = scmp.lt.s32.totalorder %s272, 0
      %s278 = ssub.s32 0, %s272
      %s279 = scalar_select %p277, %s278, %s272
      %s280 = sand.u32 %s279, 1
      %s281 = ssub.s32 0, %s280
      %s282 = scalar_select %p277, %s281, %s280
      %p283 = scmp.ne.s32.totalorder %s282, 0
      %p284 = scmp.lt.s32.totalorder %s282, 0
      %p285 = pnand %p284, %p283
      %p286 = pneg %p285
      %s287 = sadd.s32 %s282, 2
      %s288 = scalar_select %p286, %s287, %s282
      %s289 = scalar_lea.vmem [#allocation2], %s288
      %s290 = scalar_lea.sflag [#allocation3], %s288
      %s291 = smul.u32 1, 1
      %s292 = sshll.u32 %s291, 4
      %293 = dma.done %s290, %s292
      %s294 = sadd.s32 %s272, 1
      %p295 = scmp.lt.s32.totalorder %s294, 8
      // Predicated region
      $region82: #{tpu_custom_call.1} parent=78 // pred_check
        %p296 = pneg %p295
      $region83: #{tpu_custom_call.1} parent=78 // pred_check_branch
        %298 = sbr.rel (%p296) target = $region85
      $region84: #{tpu_custom_call.1} parent=78 // pred_region
        %s299 = ssub.s32 1, %s288
        %s300 = sadd.s32 %s252, %s294
        %s301 = sld [smem:[#allocation6 + %s300]]
        %p302 = scmp.gt.s32.totalorder %s301, 0
        %s303 = scalar_select %p302, %s301, 0
        %p304 = scmp.lt.s32.totalorder %s303, 127
        %s305 = scalar_select %p304, %s303, 127
        %s306 = smul.addr %s305, 16
        %s307 = scalar_lea.hbm %s1, %s306
        %s308 = scalar_lea.vmem [#allocation2], %s299
        %s309 = scalar_lea.sflag [#allocation3], %s299
        // Predicated region
        $region86: #{tpu_custom_call.1} parent=84 // pred_check
          _
        $region87: #{tpu_custom_call.1} parent=84 // pred_check_branch
          %311 = sbr.rel target = $region89
        $region88: #{tpu_custom_call.1} parent=84 // pred_region
          %312 = sst [smem:[#allocation13]] [#allocation28]
          %313 = sst [smem:[#allocation14]] [#allocation27]
        $region89: #{tpu_custom_call.1} parent=84 // pred_fallthru
          _
        %315 = shalt.err (0)
        %s317 = sshll.u32 %s308, 4
        %s318 = int_to_ptr.vmem [resolvable:$true] %s317
        %320 = dma.hbm_to_vmem [thread:$0]  %s307, 16, %s318, %s309
      $region85: #{tpu_custom_call.1} parent=78 // pred_fallthru
        _
      %v321 = vld [vmem:[#allocation4 + $0x3] sm:$0x1]
      %v322 = vld [vmem:[%s289] sm:$0x1]
      %v323 = vadd.f32 %v321, %v322
      %324 = vst [vmem:[#allocation4 + $0x3] sm:$0x1] %v323
    $region79: #{tpu_custom_call.1} parent=1 // loop_footer
      %s276 = sadd.s32 1, %s272
    $region80: #{tpu_custom_call.1} parent=1 // loop_footer_branch
      %271 = sbr.rel target = $region76
    $region81: #{tpu_custom_call.1} parent=1 // loop_exit
      _
    %s325 = sadd.s32 %s32, 32
    %s326 = sld [smem:[#allocation6 + %s325]]
    %p327 = scmp.gt.s32.totalorder %s326, 0
    %s328 = scalar_select %p327, %s326, 0
    %p329 = scmp.lt.s32.totalorder %s328, 127
    %s330 = scalar_select %p329, %s328, 127
    %s331 = smul.addr %s330, 16
    %s332 = scalar_lea.hbm %s1, %s331
    // Predicated region
    $region90: #{tpu_custom_call.1} parent=1 // pred_check
      _
    $region91: #{tpu_custom_call.1} parent=1 // pred_check_branch
      %334 = sbr.rel target = $region93
    $region92: #{tpu_custom_call.1} parent=1 // pred_region
      %335 = sst [smem:[#allocation13]] [#allocation30]
      %336 = sst [smem:[#allocation14]] [#allocation29]
    $region93: #{tpu_custom_call.1} parent=1 // pred_fallthru
      _
    %338 = shalt.err (0)
    %s340 = sshll.u32 [#allocation2], 4
    %s341 = int_to_ptr.vmem [resolvable:$true] %s340
    %343 = dma.hbm_to_vmem [thread:$0]  %s332, 16, %s341, [#allocation3]
    loop: start=0, step=1, limit=8
    $region94: #{tpu_custom_call.1} parent=1 // loop_pre_header
      _
    $region95: #{tpu_custom_call.1} parent=1 // loop_header
      %s345 = sphi 0, %s349
      %p346 = scmp.ge.s32.totalorder %s345, 8
    $region96: #{tpu_custom_call.1} parent=1 // loop_header_branch
      %348 = sbr.rel (%p346) target = $region100
    $region97: #{tpu_custom_call.1} parent=1 // loop_body
      %p350 = scmp.lt.s32.totalorder %s345, 0
      %s351 = ssub.s32 0, %s345
      %s352 = scalar_select %p350, %s351, %s345
      %s353 = sand.u32 %s352, 1
      %s354 = ssub.s32 0, %s353
      %s355 = scalar_select %p350, %s354, %s353
      %p356 = scmp.ne.s32.totalorder %s355, 0
      %p357 = scmp.lt.s32.totalorder %s355, 0
      %p358 = pnand %p357, %p356
      %p359 = pneg %p358
      %s360 = sadd.s32 %s355, 2
      %s361 = scalar_select %p359, %s360, %s355
      %s362 = scalar_lea.vmem [#allocation2], %s361
      %s363 = scalar_lea.sflag [#allocation3], %s361
      %s364 = smul.u32 1, 1
      %s365 = sshll.u32 %s364, 4
      %366 = dma.done %s363, %s365
      %s367 = sadd.s32 %s345, 1
      %p368 = scmp.lt.s32.totalorder %s367, 8
      // Predicated region
      $region101: #{tpu_custom_call.1} parent=97 // pred_check
        %p369 = pneg %p368
      $region102: #{tpu_custom_call.1} parent=97 // pred_check_branch
        %371 = sbr.rel (%p369) target = $region104
      $region103: #{tpu_custom_call.1} parent=97 // pred_region
        %s372 = ssub.s32 1, %s361
        %s373 = sadd.s32 %s325, %s367
        %s374 = sld [smem:[#allocation6 + %s373]]
        %p375 = scmp.gt.s32.totalorder %s374, 0
        %s376 = scalar_select %p375, %s374, 0
        %p377 = scmp.lt.s32.totalorder %s376, 127
        %s378 = scalar_select %p377, %s376, 127
        %s379 = smul.addr %s378, 16
        %s380 = scalar_lea.hbm %s1, %s379
        %s381 = scalar_lea.vmem [#allocation2], %s372
        %s382 = scalar_lea.sflag [#allocation3], %s372
        // Predicated region
        $region105: #{tpu_custom_call.1} parent=103 // pred_check
          _
        $region106: #{tpu_custom_call.1} parent=103 // pred_check_branch
          %384 = sbr.rel target = $region108
        $region107: #{tpu_custom_call.1} parent=103 // pred_region
          %385 = sst [smem:[#allocation13]] [#allocation32]
          %386 = sst [smem:[#allocation14]] [#allocation31]
        $region108: #{tpu_custom_call.1} parent=103 // pred_fallthru
          _
        %388 = shalt.err (0)
        %s390 = sshll.u32 %s381, 4
        %s391 = int_to_ptr.vmem [resolvable:$true] %s390
        %393 = dma.hbm_to_vmem [thread:$0]  %s380, 16, %s391, %s382
      $region104: #{tpu_custom_call.1} parent=97 // pred_fallthru
        _
      %v394 = vld [vmem:[#allocation4 + $0x4] sm:$0x1]
      %v395 = vld [vmem:[%s362] sm:$0x1]
      %v396 = vadd.f32 %v394, %v395
      %397 = vst [vmem:[#allocation4 + $0x4] sm:$0x1] %v396
    $region98: #{tpu_custom_call.1} parent=1 // loop_footer
      %s349 = sadd.s32 1, %s345
    $region99: #{tpu_custom_call.1} parent=1 // loop_footer_branch
      %344 = sbr.rel target = $region95
    $region100: #{tpu_custom_call.1} parent=1 // loop_exit
      _
    %s398 = sadd.s32 %s32, 40
    %s399 = sld [smem:[#allocation6 + %s398]]
    %p400 = scmp.gt.s32.totalorder %s399, 0
    %s401 = scalar_select %p400, %s399, 0
    %p402 = scmp.lt.s32.totalorder %s401, 127
    %s403 = scalar_select %p402, %s401, 127
    %s404 = smul.addr %s403, 16
    %s405 = scalar_lea.hbm %s1, %s404
    // Predicated region
    $region109: #{tpu_custom_call.1} parent=1 // pred_check
      _
    $region110: #{tpu_custom_call.1} parent=1 // pred_check_branch
      %407 = sbr.rel target = $region112
    $region111: #{tpu_custom_call.1} parent=1 // pred_region
      %408 = sst [smem:[#allocation13]] [#allocation34]
      %409 = sst [smem:[#allocation14]] [#allocation33]
    $region112: #{tpu_custom_call.1} parent=1 // pred_fallthru
      _
    %411 = shalt.err (0)
    %s413 = sshll.u32 [#allocation2], 4
    %s414 = int_to_ptr.vmem [resolvable:$true] %s413
    %416 = dma.hbm_to_vmem [thread:$0]  %s405, 16, %s414, [#allocation3]
    loop: start=0, step=1, limit=8
    $region113: #{tpu_custom_call.1} parent=1 // loop_pre_header
      _
    $region114: #{tpu_custom_call.1} parent=1 // loop_header
      %s418 = sphi 0, %s422
      %p419 = scmp.ge.s32.totalorder %s418, 8
    $region115: #{tpu_custom_call.1} parent=1 // loop_header_branch
      %421 = sbr.rel (%p419) target = $region119
    $region116: #{tpu_custom_call.1} parent=1 // loop_body
      %p423 = scmp.lt.s32.totalorder %s418, 0
      %s424 = ssub.s32 0, %s418
      %s425 = scalar_select %p423, %s424, %s418
      %s426 = sand.u32 %s425, 1
      %s427 = ssub.s32 0, %s426
      %s428 = scalar_select %p423, %s427, %s426
      %p429 = scmp.ne.s32.totalorder %s428, 0
      %p430 = scmp.lt.s32.totalorder %s428, 0
      %p431 = pnand %p430, %p429
      %p432 = pneg %p431
      %s433 = sadd.s32 %s428, 2
      %s434 = scalar_select %p432, %s433, %s428
      %s435 = scalar_lea.vmem [#allocation2], %s434
      %s436 = scalar_lea.sflag [#allocation3], %s434
      %s437 = smul.u32 1, 1
      %s438 = sshll.u32 %s437, 4
      %439 = dma.done %s436, %s438
      %s440 = sadd.s32 %s418, 1
      %p441 = scmp.lt.s32.totalorder %s440, 8
      // Predicated region
      $region120: #{tpu_custom_call.1} parent=116 // pred_check
        %p442 = pneg %p441
      $region121: #{tpu_custom_call.1} parent=116 // pred_check_branch
        %444 = sbr.rel (%p442) target = $region123
      $region122: #{tpu_custom_call.1} parent=116 // pred_region
        %s445 = ssub.s32 1, %s434
        %s446 = sadd.s32 %s398, %s440
        %s447 = sld [smem:[#allocation6 + %s446]]
        %p448 = scmp.gt.s32.totalorder %s447, 0
        %s449 = scalar_select %p448, %s447, 0
        %p450 = scmp.lt.s32.totalorder %s449, 127
        %s451 = scalar_select %p450, %s449, 127
        %s452 = smul.addr %s451, 16
        %s453 = scalar_lea.hbm %s1, %s452
        %s454 = scalar_lea.vmem [#allocation2], %s445
        %s455 = scalar_lea.sflag [#allocation3], %s445
        // Predicated region
        $region124: #{tpu_custom_call.1} parent=122 // pred_check
          _
        $region125: #{tpu_custom_call.1} parent=122 // pred_check_branch
          %457 = sbr.rel target = $region127
        $region126: #{tpu_custom_call.1} parent=122 // pred_region
          %458 = sst [smem:[#allocation13]] [#allocation36]
          %459 = sst [smem:[#allocation14]] [#allocation35]
        $region127: #{tpu_custom_call.1} parent=122 // pred_fallthru
          _
        %461 = shalt.err (0)
        %s463 = sshll.u32 %s454, 4
        %s464 = int_to_ptr.vmem [resolvable:$true] %s463
        %466 = dma.hbm_to_vmem [thread:$0]  %s453, 16, %s464, %s455
      $region123: #{tpu_custom_call.1} parent=116 // pred_fallthru
        _
      %v467 = vld [vmem:[#allocation4 + $0x5] sm:$0x1]
      %v468 = vld [vmem:[%s435] sm:$0x1]
      %v469 = vadd.f32 %v467, %v468
      %470 = vst [vmem:[#allocation4 + $0x5] sm:$0x1] %v469
    $region117: #{tpu_custom_call.1} parent=1 // loop_footer
      %s422 = sadd.s32 1, %s418
    $region118: #{tpu_custom_call.1} parent=1 // loop_footer_branch
      %417 = sbr.rel target = $region114
    $region119: #{tpu_custom_call.1} parent=1 // loop_exit
      _
    %s471 = sadd.s32 %s32, 48
    %s472 = sld [smem:[#allocation6 + %s471]]
    %p473 = scmp.gt.s32.totalorder %s472, 0
    %s474 = scalar_select %p473, %s472, 0
    %p475 = scmp.lt.s32.totalorder %s474, 127
    %s476 = scalar_select %p475, %s474, 127
    %s477 = smul.addr %s476, 16
    %s478 = scalar_lea.hbm %s1, %s477
    // Predicated region
    $region128: #{tpu_custom_call.1} parent=1 // pred_check
      _
    $region129: #{tpu_custom_call.1} parent=1 // pred_check_branch
      %480 = sbr.rel target = $region131
    $region130: #{tpu_custom_call.1} parent=1 // pred_region
      %481 = sst [smem:[#allocation13]] [#allocation38]
      %482 = sst [smem:[#allocation14]] [#allocation37]
    $region131: #{tpu_custom_call.1} parent=1 // pred_fallthru
      _
    %484 = shalt.err (0)
    %s486 = sshll.u32 [#allocation2], 4
    %s487 = int_to_ptr.vmem [resolvable:$true] %s486
    %489 = dma.hbm_to_vmem [thread:$0]  %s478, 16, %s487, [#allocation3]
    loop: start=0, step=1, limit=8
    $region132: #{tpu_custom_call.1} parent=1 // loop_pre_header
      _
    $region133: #{tpu_custom_call.1} parent=1 // loop_header
      %s491 = sphi 0, %s495
      %p492 = scmp.ge.s32.totalorder %s491, 8
    $region134: #{tpu_custom_call.1} parent=1 // loop_header_branch
      %494 = sbr.rel (%p492) target = $region138
    $region135: #{tpu_custom_call.1} parent=1 // loop_body
      %p496 = scmp.lt.s32.totalorder %s491, 0
      %s497 = ssub.s32 0, %s491
      %s498 = scalar_select %p496, %s497, %s491
      %s499 = sand.u32 %s498, 1
      %s500 = ssub.s32 0, %s499
      %s501 = scalar_select %p496, %s500, %s499
      %p502 = scmp.ne.s32.totalorder %s501, 0
      %p503 = scmp.lt.s32.totalorder %s501, 0
      %p504 = pnand %p503, %p502
      %p505 = pneg %p504
      %s506 = sadd.s32 %s501, 2
      %s507 = scalar_select %p505, %s506, %s501
      %s508 = scalar_lea.vmem [#allocation2], %s507
      %s509 = scalar_lea.sflag [#allocation3], %s507
      %s510 = smul.u32 1, 1
      %s511 = sshll.u32 %s510, 4
      %512 = dma.done %s509, %s511
      %s513 = sadd.s32 %s491, 1
      %p514 = scmp.lt.s32.totalorder %s513, 8
      // Predicated region
      $region139: #{tpu_custom_call.1} parent=135 // pred_check
        %p515 = pneg %p514
      $region140: #{tpu_custom_call.1} parent=135 // pred_check_branch
        %517 = sbr.rel (%p515) target = $region142
      $region141: #{tpu_custom_call.1} parent=135 // pred_region
        %s518 = ssub.s32 1, %s507
        %s519 = sadd.s32 %s471, %s513
        %s520 = sld [smem:[#allocation6 + %s519]]
        %p521 = scmp.gt.s32.totalorder %s520, 0
        %s522 = scalar_select %p521, %s520, 0
        %p523 = scmp.lt.s32.totalorder %s522, 127
        %s524 = scalar_select %p523, %s522, 127
        %s525 = smul.addr %s524, 16
        %s526 = scalar_lea.hbm %s1, %s525
        %s527 = scalar_lea.vmem [#allocation2], %s518
        %s528 = scalar_lea.sflag [#allocation3], %s518
        // Predicated region
        $region143: #{tpu_custom_call.1} parent=141 // pred_check
          _
        $region144: #{tpu_custom_call.1} parent=141 // pred_check_branch
          %530 = sbr.rel target = $region146
        $region145: #{tpu_custom_call.1} parent=141 // pred_region
          %531 = sst [smem:[#allocation13]] [#allocation40]
          %532 = sst [smem:[#allocation14]] [#allocation39]
        $region146: #{tpu_custom_call.1} parent=141 // pred_fallthru
          _
        %534 = shalt.err (0)
        %s536 = sshll.u32 %s527, 4
        %s537 = int_to_ptr.vmem [resolvable:$true] %s536
        %539 = dma.hbm_to_vmem [thread:$0]  %s526, 16, %s537, %s528
      $region142: #{tpu_custom_call.1} parent=135 // pred_fallthru
        _
      %v540 = vld [vmem:[#allocation4 + $0x6] sm:$0x1]
      %v541 = vld [vmem:[%s508] sm:$0x1]
      %v542 = vadd.f32 %v540, %v541
      %543 = vst [vmem:[#allocation4 + $0x6] sm:$0x1] %v542
    $region136: #{tpu_custom_call.1} parent=1 // loop_footer
      %s495 = sadd.s32 1, %s491
    $region137: #{tpu_custom_call.1} parent=1 // loop_footer_branch
      %490 = sbr.rel target = $region133
    $region138: #{tpu_custom_call.1} parent=1 // loop_exit
      _
    %s544 = sadd.s32 %s32, 56
    %s545 = sld [smem:[#allocation6 + %s544]]
    %p546 = scmp.gt.s32.totalorder %s545, 0
    %s547 = scalar_select %p546, %s545, 0
    %p548 = scmp.lt.s32.totalorder %s547, 127
    %s549 = scalar_select %p548, %s547, 127
    %s550 = smul.addr %s549, 16
    %s551 = scalar_lea.hbm %s1, %s550
    // Predicated region
    $region147: #{tpu_custom_call.1} parent=1 // pred_check
      _
    $region148: #{tpu_custom_call.1} parent=1 // pred_check_branch
      %553 = sbr.rel target = $region150
    $region149: #{tpu_custom_call.1} parent=1 // pred_region
      %554 = sst [smem:[#allocation13]] [#allocation42]
      %555 = sst [smem:[#allocation14]] [#allocation41]
    $region150: #{tpu_custom_call.1} parent=1 // pred_fallthru
      _
    %557 = shalt.err (0)
    %s559 = sshll.u32 [#allocation2], 4
    %s560 = int_to_ptr.vmem [resolvable:$true] %s559
    %562 = dma.hbm_to_vmem [thread:$0]  %s551, 16, %s560, [#allocation3]
    loop: start=0, step=1, limit=8
    $region151: #{tpu_custom_call.1} parent=1 // loop_pre_header
      _
    $region152: #{tpu_custom_call.1} parent=1 // loop_header
      %s564 = sphi 0, %s568
      %p565 = scmp.ge.s32.totalorder %s564, 8
    $region153: #{tpu_custom_call.1} parent=1 // loop_header_branch
      %567 = sbr.rel (%p565) target = $region157
    $region154: #{tpu_custom_call.1} parent=1 // loop_body
      %p569 = scmp.lt.s32.totalorder %s564, 0
      %s570 = ssub.s32 0, %s564
      %s571 = scalar_select %p569, %s570, %s564
      %s572 = sand.u32 %s571, 1
      %s573 = ssub.s32 0, %s572
      %s574 = scalar_select %p569, %s573, %s572
      %p575 = scmp.ne.s32.totalorder %s574, 0
      %p576 = scmp.lt.s32.totalorder %s574, 0
      %p577 = pnand %p576, %p575
      %p578 = pneg %p577
      %s579 = sadd.s32 %s574, 2
      %s580 = scalar_select %p578, %s579, %s574
      %s581 = scalar_lea.vmem [#allocation2], %s580
      %s582 = scalar_lea.sflag [#allocation3], %s580
      %s583 = smul.u32 1, 1
      %s584 = sshll.u32 %s583, 4
      %585 = dma.done %s582, %s584
      %s586 = sadd.s32 %s564, 1
      %p587 = scmp.lt.s32.totalorder %s586, 8
      // Predicated region
      $region158: #{tpu_custom_call.1} parent=154 // pred_check
        %p588 = pneg %p587
      $region159: #{tpu_custom_call.1} parent=154 // pred_check_branch
        %590 = sbr.rel (%p588) target = $region161
      $region160: #{tpu_custom_call.1} parent=154 // pred_region
        %s591 = ssub.s32 1, %s580
        %s592 = sadd.s32 %s544, %s586
        %s593 = sld [smem:[#allocation6 + %s592]]
        %p594 = scmp.gt.s32.totalorder %s593, 0
        %s595 = scalar_select %p594, %s593, 0
        %p596 = scmp.lt.s32.totalorder %s595, 127
        %s597 = scalar_select %p596, %s595, 127
        %s598 = smul.addr %s597, 16
        %s599 = scalar_lea.hbm %s1, %s598
        %s600 = scalar_lea.vmem [#allocation2], %s591
        %s601 = scalar_lea.sflag [#allocation3], %s591
        // Predicated region
        $region162: #{tpu_custom_call.1} parent=160 // pred_check
          _
        $region163: #{tpu_custom_call.1} parent=160 // pred_check_branch
          %603 = sbr.rel target = $region165
        $region164: #{tpu_custom_call.1} parent=160 // pred_region
          %604 = sst [smem:[#allocation13]] [#allocation44]
          %605 = sst [smem:[#allocation14]] [#allocation43]
        $region165: #{tpu_custom_call.1} parent=160 // pred_fallthru
          _
        %607 = shalt.err (0)
        %s609 = sshll.u32 %s600, 4
        %s610 = int_to_ptr.vmem [resolvable:$true] %s609
        %612 = dma.hbm_to_vmem [thread:$0]  %s599, 16, %s610, %s601
      $region161: #{tpu_custom_call.1} parent=154 // pred_fallthru
        _
      %v613 = vld [vmem:[#allocation4 + $0x7] sm:$0x1]
      %v614 = vld [vmem:[%s581] sm:$0x1]
      %v615 = vadd.f32 %v613, %v614
      %616 = vst [vmem:[#allocation4 + $0x7] sm:$0x1] %v615
    $region155: #{tpu_custom_call.1} parent=1 // loop_footer
      %s568 = sadd.s32 1, %s564
    $region156: #{tpu_custom_call.1} parent=1 // loop_footer_branch
      %563 = sbr.rel target = $region152
    $region157: #{tpu_custom_call.1} parent=1 // loop_exit
      _
    %v617 = vld [vmem:[#allocation4] sm:$0xff]
    %v618 = vmul.f32 %v617, 0.125
    %v619 = vld [vmem:[#allocation7] sm:$0xff]
    %v620 = vld [vmem:[#allocation7 + $0x8] sm:$0xff]
    %v621 = vld [vmem:[#allocation7 + $0x10] sm:$0xff]
    %v622 = vld [vmem:[#allocation7 + $0x18] sm:$0xff]
    %v623 = vld [vmem:[#allocation7 + $0x20] sm:$0xff]
    %v624 = vld [vmem:[#allocation7 + $0x28] sm:$0xff]
    %v625 = vld [vmem:[#allocation7 + $0x30] sm:$0xff]
    %v626 = vld [vmem:[#allocation7 + $0x38] sm:$0xff]
    %v627 = vld [vmem:[#allocation7 + $0x40] sm:$0xff]
    %v628 = vld [vmem:[#allocation7 + $0x48] sm:$0xff]
    %v629 = vld [vmem:[#allocation7 + $0x50] sm:$0xff]
    %v630 = vld [vmem:[#allocation7 + $0x58] sm:$0xff]
    %v631 = vld [vmem:[#allocation7 + $0x60] sm:$0xff]
    %v632 = vld [vmem:[#allocation7 + $0x68] sm:$0xff]
    %v633 = vld [vmem:[#allocation7 + $0x70] sm:$0xff]
    %v634 = vld [vmem:[#allocation7 + $0x78] sm:$0xff]
    %v635 = vld [vmem:[%s3] sm:$0x1]
    %v637 = vlaneseq
    %v638 = vshrl.u32 %v637, 7
    %v639 = vsub.s32 0, %v638
    %v640 = vrot.slane %v635, %v639
    %642 = vmatprep.subr.mxu0 0.0
    %643 = vmatpush1.msra.mxu0 %v619
    %644 = vmatprep.subr.mxu0 0.0
    %645 = vmatpush1.msra.mxu0 %v620
    %646 = vmatprep.subr.mxu0 0.0
    %647 = vmatpush1.msra.mxu0 %v621
    %648 = vmatprep.subr.mxu0 0.0
    %649 = vmatpush1.msra.mxu0 %v622
    %650 = vmatprep.subr.mxu0 0.0
    %651 = vmatpush1.msra.mxu0 %v623
    %652 = vmatprep.subr.mxu0 0.0
    %653 = vmatpush1.msra.mxu0 %v624
    %654 = vmatprep.subr.mxu0 0.0
    %655 = vmatpush1.msra.mxu0 %v625
    %656 = vmatprep.subr.mxu0 0.0
    %657 = vmatpush1.msra.mxu0 %v626
    %658 = vmatprep.subr.mxu0 0.0
    %659 = vmatpush1.msra.mxu0 %v627
    %660 = vmatprep.subr.mxu0 0.0
    %661 = vmatpush1.msra.mxu0 %v628
    %662 = vmatprep.subr.mxu0 0.0
    %663 = vmatpush1.msra.mxu0 %v629
    %664 = vmatprep.subr.mxu0 0.0
    %665 = vmatpush1.msra.mxu0 %v630
    %666 = vmatprep.subr.mxu0 0.0
    %667 = vmatpush1.msra.mxu0 %v631
    %668 = vmatprep.subr.mxu0 0.0
    %669 = vmatpush1.msra.mxu0 %v632
    %670 = vmatprep.subr.mxu0 0.0
    %671 = vmatpush1.msra.mxu0 %v633
    %672 = vmatprep.subr.mxu0 0.0
    %673 = vmatpush1.msra.mxu0 %v634
    %674 = vmatprep.subr.mxu0 0.0
    %675 = vmatpush1.msra.mxu0 0.0
    %676 = vmatprep.subr.mxu0 0.0
    %677 = vmatpush1.msra.mxu0 0.0
    %678 = vmatprep.subr.mxu0 0.0
    %679 = vmatpush1.msra.mxu0 0.0
    %680 = vmatprep.subr.mxu0 0.0
    %681 = vmatpush1.msra.mxu0 0.0
    %682 = vmatprep.subr.mxu0 0.0
    %683 = vmatpush1.msra.mxu0 0.0
    %684 = vmatprep.subr.mxu0 0.0
    %685 = vmatpush1.msra.mxu0 0.0
    %686 = vmatprep.subr.mxu0 0.0
    %687 = vmatpush1.msra.mxu0 0.0
    %688 = vmatprep.subr.mxu0 0.0
    %689 = vmatpush1.msra.mxu0 0.0
    %690 = vmatprep.subr.mxu0 0.0
    %691 = vmatpush1.msra.mxu0 0.0
    %692 = vmatprep.subr.mxu0 0.0
    %693 = vmatpush1.msra.mxu0 0.0
    %694 = vmatprep.subr.mxu0 0.0
    %695 = vmatpush1.msra.mxu0 0.0
    %696 = vmatprep.subr.mxu0 0.0
    %697 = vmatpush1.msra.mxu0 0.0
    %698 = vmatprep.subr.mxu0 0.0
    %699 = vmatpush1.msra.mxu0 0.0
    %700 = vmatprep.subr.mxu0 0.0
    %701 = vmatpush1.msra.mxu0 0.0
    %702 = vmatprep.subr.mxu0 0.0
    %703 = vmatpush1.msra.mxu0 0.0
    %704 = vmatprep.subr.mxu0 0.0
    %705 = vmatpush1.msra.mxu0 0.0
    %706 = vmatprep.mubr.f32.mxu0 0.0
    %707 = vmatmul.mubr.f32.gmra.mrb[0].mxu0 %v618
    %v708 = vpop.f32.mrb[0].mxu0
    %v709 = vadd.f32 %v640, %v708
    %v710 = vpop.f32.mrb[0].mxu0
    %711 = vdwg.mxu0
    %712 = vst [vmem:[#allocation10] sm:$0xff] %v709
    // Predicated region
    $region166: #{tpu_custom_call.1} parent=1 // pred_check
      _
    $region167: #{tpu_custom_call.1} parent=1 // pred_check_branch
      %714 = sbr.rel (0) target = $region169
    $region168: #{tpu_custom_call.1} parent=1 // pred_region
      %s716 = ssub.s32 128, 128
      %717 = vsyncadd [#allocation9], %s716
      %s719 = sshll.u32 [#allocation10], 4
      %s720 = int_to_ptr.vmem [resolvable:$true] %s719
      %722 = dma.vmem_to_hbm [thread:$0]  %s720, 128, %s4, [#allocation9]
    $region169: #{tpu_custom_call.1} parent=1 // pred_fallthru
      _
    // Predicated region
    $region170: #{tpu_custom_call.1} parent=1 // pred_check
      _
    $region171: #{tpu_custom_call.1} parent=1 // pred_check_branch
      %724 = sbr.rel (0) target = $region173
    $region172: #{tpu_custom_call.1} parent=1 // pred_region
      %725 = dma.done [#allocation9], 128
    $region173: #{tpu_custom_call.1} parent=1 // pred_fallthru
      _
    %726 = vsyncpa [#allocation8], 1
    %727 = vsyncpa [#allocation9], 1
  %728 = vsyncmov [#allocation3]
  %s729 = vpop.sfrf %728
  %p730 = scmp.eq.s32.totalorder %s729, 0
  %p731 = pneg %p730
  %733 = shalt.err (%p731)
  %s734 = scalar_lea.sflag [#allocation3], 1
  %735 = vsyncmov %s734
  %s736 = vpop.sfrf %735
  %p737 = scmp.eq.s32.totalorder %s736, 0
  %p738 = pneg %p737
  %740 = shalt.err (%p738)

</llo_original>
